<compile_context>
chip_gen: v6e
topology: v6e:2x2x1
jax: 0.10.0
libtpu: 0.0.40
codegen_flags: <defaults>
</compile_context>

<pallas_src>
import math

import jax
import jax.numpy as jnp
from jax import lax
from jax.experimental import pallas as pl
from jax.experimental.pallas import tpu as pltpu

# ---------------- model hyper-parameters (small, consistent with the module) --
B = 2              # batch
N = 8              # sequence length
C = 32             # embedding_dim
HEADS = 4          # heads
HEAD_DIM = C // HEADS
MLP = 512          # mlp_dim (module global)
DEPTH = 1          # depth (module global)
EPS = 1e-5         # nn.LayerNorm default eps
SCALE = HEAD_DIM ** (-0.5)
T = B * N          # flattened token count

# bf16 operands are MXU-native on v5e/v6e/v7x; accumulation stays f32.
MATMUL_DTYPE = jnp.bfloat16


# ---------------- small math helpers (f32 elementwise path) ------------------
def _layer_norm(v, g, b):
    mu = jnp.mean(v, axis=-1, keepdims=True)
    var = jnp.mean((v - mu) ** 2, axis=-1, keepdims=True)   # biased, like PyTorch LN
    return (v - mu) * lax.rsqrt(var + EPS) * g + b


def _gelu_tanh(x):
    # tanh-approximate GELU: the tanh goes to the (otherwise idle) EUP slot
    # instead of an erf VPU polynomial.  Deviation from exact erf GELU is far
    # below the test tolerance at these magnitudes.
    c = math.sqrt(2.0 / math.pi)
    return 0.5 * x * (1.0 + jnp.tanh(c * (x + 0.044715 * x * x * x)))


def _gelu_exact(x):
    # exact erf-based gelu (PyTorch F.gelu default) -- used by the reference
    return 0.5 * x * (1.0 + lax.erf(x / math.sqrt(2.0)))


# ---------------- the kernel: one whole transformer block, whole batch -------
def transformer_block_kernel(
    x_ref, pos_ref, mask_ref, vec_ref,
    wqkv_ref, wproj_ref, ffn1_ref, w2_ref,
    o_ref,
):
    f32 = jnp.float32
    md = MATMUL_DTYPE

    # x / pos arrive flattened: (T, C) = (B*N, C)
    x = x_ref[...].astype(f32) + pos_ref[...].astype(f32)             # (T, C)

    # Packed LN / bias vectors: rows = [g1, bln1, bproj, g2, bln2, b2, 0, 0]
    vec = vec_ref[...]
    g1, bln1, bproj = vec[0:1], vec[1:2], vec[2:3]
    g2, bln2, b2 = vec[3:4], vec[4:5], vec[5:6]

    # ---- Residual(PreNormDrop(SelfAttention)) ------------------------------
    # TODO(synk): all dropout layers are identity (inference mode).
    ln1 = _layer_norm(x, g1, bln1)                                     # (T, C)

    # Fused per-head QKV: broadcast ln1 across the stacked (3*H, C, hd) weight
    # slab so heads land on a leading axis -- no in-kernel relayout of q/k/v.
    ln1_b = jnp.broadcast_to(ln1.astype(md), (3 * HEADS, T, C))        # (3H, T, C)
    qkv = lax.dot_general(
        ln1_b, wqkv_ref[...],
        dimension_numbers=(((2,), (1,)), ((0,), (0,))),
        preferred_element_type=f32)                                    # (3H, T, hd)
    q = qkv[0:HEADS]                                                   # (H, T, hd)
    k = qkv[HEADS:2 * HEADS]
    v = qkv[2 * HEADS:3 * HEADS]

    # Head-batched scores; block-diagonal batch bias (precomputed wrapper-side)
    s = lax.dot_general(
        q.astype(md), k.astype(md),
        dimension_numbers=(((2,), (2,)), ((0,), (0,))),
        preferred_element_type=f32) * SCALE                            # (H, T, T)
    s = s + mask_ref[...][None, :, :]                                  # 0 / -1e30 bias

    # One softmax over the whole (H, T, T) slab: single max / exp / sum / rcp.
    s = s - jnp.max(s, axis=-1, keepdims=True)
    p = jnp.exp(s)
    p = p * pl.reciprocal(jnp.sum(p, axis=-1, keepdims=True), approx=True)

    o = lax.dot_general(
        p.astype(md), v.astype(md),
        dimension_numbers=(((2,), (1,)), ((0,), (0,))),
        preferred_element_type=f32)                                    # (H, T, hd)

    # Head-concat folded into the projection: attn = sum_h o_h @ Wproj_h.
    # (Mosaic dot_general has no multi-contracting-dim path, so do a batched
    #  matmul + H-1 vreg adds -- negligible at (T, C) = 2 vregs per head.)
    ph = lax.dot_general(
        o.astype(md), wproj_ref[...],
        dimension_numbers=(((2,), (1,)), ((0,), (0,))),
        preferred_element_type=f32)                                    # (H, T, C)
    attn = ph[0]
    for hh in range(1, HEADS):
        attn = attn + ph[hh]                                           # (T, C)

    x = x + attn + bproj                                               # proj bias + residual

    # ---- Residual(PreNorm(FeedForward)) ------------------------------------
    ln2 = _layer_norm(x, g2, bln2)
    ffn1 = ffn1_ref[...]                                               # (C+1, MLP) bf16
    w1 = ffn1[0:C]
    b1 = ffn1[C:C + 1].astype(f32)
    h = jnp.dot(ln2.astype(md), w1, preferred_element_type=f32) + b1   # (T, MLP)
    h = _gelu_tanh(h)
    x = x + jnp.dot(h.astype(md), w2_ref[...], preferred_element_type=f32) + b2

    o_ref[...] = x.astype(o_ref.dtype)


# ---------------- wrapper-side layout plumbing (free, XLA side) --------------
def prepare_layer(params):
    """Split fused weights per head and pack everything into 5 VMEM slabs."""
    (g1, bln1, wqkv, wproj, bproj, g2, bln2, w1, b1, w2, b2) = params

    # Wqkv columns are ordered [3, heads, head_dim] (matches the PyTorch
    # reshape(B, N, 3, H, hd).permute(2, 0, 3, 1, 4)).
    wqkv_h = wqkv.reshape(C, 3, HEADS, HEAD_DIM)                        # (C, 3, H, hd)
    wqkv_stack = jnp.transpose(wqkv_h, (1, 2, 0, 3)).reshape(
        3 * HEADS, C, HEAD_DIM)                                         # (3H, C, hd)

    # Wproj rows are ordered (head, head_dim) because of the concat layout.
    wproj_stack = wproj.reshape(HEADS, HEAD_DIM, C)                     # (H, hd, C)

    # LN gains/biases + biases packed into one (8, C) slab.
    vecs = jnp.concatenate(
        [g1, bln1, bproj, g2, bln2, b2, jnp.zeros((2, C), jnp.float32)], axis=0)

    # FFN first layer weight + bias packed into one (C+1, MLP) slab.
    ffn1 = jnp.concatenate([w1, b1], axis=0)                            # (C+1, MLP)

    return (vecs.astype(jnp.float32),
            wqkv_stack.astype(MATMUL_DTYPE),
            wproj_stack.astype(MATMUL_DTYPE),
            ffn1.astype(MATMUL_DTYPE),
            w2.astype(MATMUL_DTYPE))


def transformer_block(x2d, pos2d, mask, packed):
    vmem = pl.BlockSpec(memory_space=pltpu.MemorySpace.VMEM)
    n_inputs = 3 + len(packed)
    return pl.pallas_call(
        transformer_block_kernel,
        out_shape=jax.ShapeDtypeStruct((T, C), x2d.dtype),
        in_specs=[vmem] * n_inputs,
        out_specs=vmem,
        # No grid: one invocation covers the whole batch; weights DMA'd to VMEM
        # exactly once (~90 KiB total footprint).
        # TODO(synk): at production sizes, tile attention flash-style (grid over
        # query blocks, KV axis "arbitrary", batch/head axes "parallel" so v7x's
        # second TensorCore is used) and present a lane-dense (multiple-of-128)
        # output slab; pointless at (16, 32).
    )(x2d, pos2d, mask, *packed)


def transformer_forward(x, pos, params_per_layer):
    # for j in range(depth): x = x + pos ; attention block ; ffn block
    x2d = x.reshape(T, C)           # wrapper-side flatten (free)
    pos2d = pos.reshape(T, C)
    # Block-diagonal batch mask as an additive bias: token i attends only to
    # tokens of its own batch element.
    row = jnp.arange(T, dtype=jnp.int32) // N
    mask = jnp.where(row[:, None] == row[None, :], 0.0, -1e30).astype(jnp.float32)
    for j in range(DEPTH):
        # TODO(synk): for DEPTH > 1, stack per-layer weights with a leading
        # depth axis and run one pallas_call with grid=(DEPTH,) (x resident as
        # the output carry) to avoid re-paying launch + weight DMA per layer.
        x2d = transformer_block(x2d, pos2d, mask, prepare_layer(params_per_layer[j]))
    return x2d.reshape(B, N, C)


# ---------------- plain-JAX reference (for a sanity check) -------------------
def reference_forward(x, pos, params_per_layer):
    for j in range(DEPTH):
        (g1, bln1, wqkv, wproj, bproj, g2, bln2, w1, b1, w2, b2) = params_per_layer[j]
        x = x + pos
        ln1 = _layer_norm(x, g1[0], bln1[0])
        qkv = ln1 @ wqkv                                      # (B, N, 3C)
        qkv = qkv.reshape(B, N, 3, HEADS, HEAD_DIM).transpose(2, 0, 3, 1, 4)
        q, k, v = qkv[0], qkv[1], qkv[2]                      # (B, H, N, hd)
        attn = jnp.einsum("bhnd,bhmd->bhnm", q, k) * SCALE
        attn = jax.nn.softmax(attn, axis=-1)
        o = jnp.einsum("bhnm,bhmd->bhnd", attn, v)
        o = o.transpose(0, 2, 1, 3).reshape(B, N, C)
        x = x + (o @ wproj + bproj[0])
        ln2 = _layer_norm(x, g2[0], bln2[0])
        h = _gelu_exact(ln2 @ w1 + b1[0])
        x = x + (h @ w2 + b2[0])
    return x


def init_params(key):
    ks = jax.random.split(key, 8)
    s = 0.02
    g1 = jnp.ones((1, C), jnp.float32)
    bln1 = jnp.zeros((1, C), jnp.float32)
    wqkv = jax.random.normal(ks[0], (C, 3 * C), jnp.float32) * s
    wproj = jax.random.normal(ks[1], (C, C), jnp.float32) * s
    bproj = jax.random.normal(ks[2], (1, C), jnp.float32) * s
    g2 = jnp.ones((1, C), jnp.float32)
    bln2 = jnp.zeros((1, C), jnp.float32)
    w1 = jax.random.normal(ks[3], (C, MLP), jnp.float32) * s
    b1 = jax.random.normal(ks[4], (1, MLP), jnp.float32) * s
    w2 = jax.random.normal(ks[5], (MLP, C), jnp.float32) * s
    b2 = jax.random.normal(ks[6], (1, C), jnp.float32) * s
    return (g1, bln1, wqkv, wproj, bproj, g2, bln2, w1, b1, w2, b2)


if __name__ == "__main__":
    key = jax.random.PRNGKey(0)
    kx, kp, kw = jax.random.split(key, 3)
    x = jax.random.normal(kx, (B, N, C), jnp.float32)
    pos = jax.random.normal(kp, (B, N, C), jnp.float32)
    params_per_layer = [init_params(jax.random.fold_in(kw, j)) for j in range(DEPTH)]

    out = jax.jit(transformer_forward)(x, pos, params_per_layer)
    out = jax.block_until_ready(out)

    ref = reference_forward(x, pos, params_per_layer)
    assert out.shape == (B, N, C)
    # Modest tolerance: bf16 matmul operands (f32 accumulation), EUP approximate
    # reciprocal in the softmax, tanh-approximate GELU.
    assert jnp.allclose(out, ref, atol=3e-3, rtol=3e-3), "mismatch vs JAX reference"
    print("KERNEL_OK")
</pallas_src>

<mosaic_0001>
module attributes {stable_mosaic.version = 11 : i64} {
  func.func @transformer_block_kernel(%arg0: memref<16x32xf32, #tpu.memory_space<vmem>>, %arg1: memref<16x32xf32, #tpu.memory_space<vmem>>, %arg2: memref<16x16xf32, #tpu.memory_space<vmem>>, %arg3: memref<8x32xf32, #tpu.memory_space<vmem>>, %arg4: memref<12x32x8xbf16, #tpu.memory_space<vmem>>, %arg5: memref<4x8x32xbf16, #tpu.memory_space<vmem>>, %arg6: memref<33x512xbf16, #tpu.memory_space<vmem>>, %arg7: memref<512x32xbf16, #tpu.memory_space<vmem>>, %arg8: memref<16x32xf32, #tpu.memory_space<vmem>>) attributes {dimension_semantics = [], scalar_prefetch = 0 : i64, scratch_operands = 0 : i64, tpu.core_type = #tpu.core_type<tc>} {
    %c0 = arith.constant 0 : index
    %c0_0 = arith.constant 0 : index
    %0 = vector.load %arg0[%c0, %c0_0] : memref<16x32xf32, #tpu.memory_space<vmem>>, vector<16x32xf32>
    %c0_1 = arith.constant 0 : index
    %c0_2 = arith.constant 0 : index
    %1 = vector.load %arg1[%c0_1, %c0_2] : memref<16x32xf32, #tpu.memory_space<vmem>>, vector<16x32xf32>
    %2 = arith.addf %0, %1 : vector<16x32xf32>
    %c0_3 = arith.constant 0 : index
    %c0_4 = arith.constant 0 : index
    %3 = vector.load %arg3[%c0_3, %c0_4] : memref<8x32xf32, #tpu.memory_space<vmem>>, vector<8x32xf32>
    %4 = vector.extract_strided_slice %3 {offsets = [0, 0], sizes = [1, 32], strides = [1, 1]} : vector<8x32xf32> to vector<1x32xf32>
    %5 = vector.extract_strided_slice %3 {offsets = [1, 0], sizes = [1, 32], strides = [1, 1]} : vector<8x32xf32> to vector<1x32xf32>
    %6 = vector.extract_strided_slice %3 {offsets = [2, 0], sizes = [1, 32], strides = [1, 1]} : vector<8x32xf32> to vector<1x32xf32>
    %7 = vector.extract_strided_slice %3 {offsets = [3, 0], sizes = [1, 32], strides = [1, 1]} : vector<8x32xf32> to vector<1x32xf32>
    %8 = vector.extract_strided_slice %3 {offsets = [4, 0], sizes = [1, 32], strides = [1, 1]} : vector<8x32xf32> to vector<1x32xf32>
    %9 = vector.extract_strided_slice %3 {offsets = [5, 0], sizes = [1, 32], strides = [1, 1]} : vector<8x32xf32> to vector<1x32xf32>
    %cst = arith.constant dense<0.000000e+00> : vector<16xf32>
    %10 = vector.multi_reduction <add>, %2, %cst [1] : vector<16x32xf32> to vector<16xf32>
    %11 = vector.shape_cast %10 : vector<16xf32> to vector<16x1xf32>
    %cst_5 = arith.constant 3.200000e+01 : f32
    %12 = vector.broadcast %cst_5 : f32 to vector<16x1xf32>
    %13 = arith.divf %11, %12 : vector<16x1xf32>
    %14 = vector.broadcast %13 : vector<16x1xf32> to vector<16x32xf32>
    %15 = arith.subf %2, %14 : vector<16x32xf32>
    %16 = arith.mulf %15, %15 : vector<16x32xf32>
    %cst_6 = arith.constant dense<0.000000e+00> : vector<16xf32>
    %17 = vector.multi_reduction <add>, %16, %cst_6 [1] : vector<16x32xf32> to vector<16xf32>
    %18 = vector.shape_cast %17 : vector<16xf32> to vector<16x1xf32>
    %cst_7 = arith.constant 3.200000e+01 : f32
    %19 = vector.broadcast %cst_7 : f32 to vector<16x1xf32>
    %20 = arith.divf %18, %19 : vector<16x1xf32>
    %21 = vector.broadcast %13 : vector<16x1xf32> to vector<16x32xf32>
    %22 = arith.subf %2, %21 : vector<16x32xf32>
    %cst_8 = arith.constant 9.99999974E-6 : f32
    %23 = vector.broadcast %cst_8 : f32 to vector<16x1xf32>
    %24 = arith.addf %20, %23 : vector<16x1xf32>
    %25 = math.rsqrt %24 : vector<16x1xf32>
    %26 = vector.broadcast %25 : vector<16x1xf32> to vector<16x32xf32>
    %27 = arith.mulf %22, %26 : vector<16x32xf32>
    %28 = vector.broadcast %4 : vector<1x32xf32> to vector<16x32xf32>
    %29 = arith.mulf %27, %28 : vector<16x32xf32>
    %30 = vector.broadcast %5 : vector<1x32xf32> to vector<16x32xf32>
    %31 = arith.addf %29, %30 : vector<16x32xf32>
    %32 = arith.truncf %31 : vector<16x32xf32> to vector<16x32xbf16>
    %33 = vector.shape_cast %32 : vector<16x32xbf16> to vector<1x16x32xbf16>
    %34 = vector.broadcast %33 : vector<1x16x32xbf16> to vector<12x16x32xbf16>
    %c0_9 = arith.constant 0 : index
    %c0_10 = arith.constant 0 : index
    %c0_11 = arith.constant 0 : index
    %35 = vector.load %arg4[%c0_9, %c0_10, %c0_11] : memref<12x32x8xbf16, #tpu.memory_space<vmem>>, vector<12x32x8xbf16>
    %cst_12 = arith.constant dense<0.000000e+00> : vector<12x16x8xf32>
    %36 = tpu.matmul %34, %35, %cst_12 {dimension_numbers = #tpu.dot_dimension_numbers<[2], [1], [1], [2], [0, 0, 0, 1, 1, 2], [0], [0]>} : vector<12x16x32xbf16>, vector<12x32x8xbf16>, vector<12x16x8xf32> -> vector<12x16x8xf32>
    %37 = vector.extract_strided_slice %36 {offsets = [0, 0, 0], sizes = [4, 16, 8], strides = [1, 1, 1]} : vector<12x16x8xf32> to vector<4x16x8xf32>
    %38 = vector.extract_strided_slice %36 {offsets = [4, 0, 0], sizes = [4, 16, 8], strides = [1, 1, 1]} : vector<12x16x8xf32> to vector<4x16x8xf32>
    %39 = vector.extract_strided_slice %36 {offsets = [8, 0, 0], sizes = [4, 16, 8], strides = [1, 1, 1]} : vector<12x16x8xf32> to vector<4x16x8xf32>
    %40 = arith.truncf %37 : vector<4x16x8xf32> to vector<4x16x8xbf16>
    %41 = arith.truncf %38 : vector<4x16x8xf32> to vector<4x16x8xbf16>
    %cst_13 = arith.constant dense<0.000000e+00> : vector<4x16x16xf32>
    %42 = tpu.matmul %40, %41, %cst_13 {dimension_numbers = #tpu.dot_dimension_numbers<[2], [2], [1], [1], [0, 0, 0, 1, 1, 1], [0], [0]>} : vector<4x16x8xbf16>, vector<4x16x8xbf16>, vector<4x16x16xf32> -> vector<4x16x16xf32>
    %cst_14 = arith.constant 0.353553385 : f32
    %43 = vector.broadcast %cst_14 : f32 to vector<4x16x16xf32>
    %44 = arith.mulf %42, %43 : vector<4x16x16xf32>
    %c0_15 = arith.constant 0 : index
    %c0_16 = arith.constant 0 : index
    %45 = vector.load %arg2[%c0_15, %c0_16] : memref<16x16xf32, #tpu.memory_space<vmem>>, vector<16x16xf32>
    %46 = vector.shape_cast %45 : vector<16x16xf32> to vector<1x16x16xf32>
    %47 = vector.broadcast %46 : vector<1x16x16xf32> to vector<4x16x16xf32>
    %48 = arith.addf %44, %47 : vector<4x16x16xf32>
    %cst_17 = arith.constant dense<0xFF800000> : vector<4x16xf32>
    %49 = vector.multi_reduction <maximumf>, %48, %cst_17 [2] : vector<4x16x16xf32> to vector<4x16xf32>
    %50 = vector.shape_cast %49 : vector<4x16xf32> to vector<4x16x1xf32>
    %51 = vector.broadcast %50 : vector<4x16x1xf32> to vector<4x16x16xf32>
    %52 = arith.subf %48, %51 : vector<4x16x16xf32>
    %53 = math.exp %52 : vector<4x16x16xf32>
    %cst_18 = arith.constant dense<0.000000e+00> : vector<4x16xf32>
    %54 = vector.multi_reduction <add>, %53, %cst_18 [2] : vector<4x16x16xf32> to vector<4x16xf32>
    %55 = vector.shape_cast %54 : vector<4x16xf32> to vector<4x16x1xf32>
    %56 = tpu.reciprocal %55 {approx = true} : vector<4x16x1xf32> -> vector<4x16x1xf32>
    %57 = vector.broadcast %56 : vector<4x16x1xf32> to vector<4x16x16xf32>
    %58 = arith.mulf %53, %57 : vector<4x16x16xf32>
    %59 = arith.truncf %58 : vector<4x16x16xf32> to vector<4x16x16xbf16>
    %60 = arith.truncf %39 : vector<4x16x8xf32> to vector<4x16x8xbf16>
    %cst_19 = arith.constant dense<0.000000e+00> : vector<4x16x8xf32>
    %61 = tpu.matmul %59, %60, %cst_19 {dimension_numbers = #tpu.dot_dimension_numbers<[2], [1], [1], [2], [0, 0, 0, 1, 1, 2], [0], [0]>} : vector<4x16x16xbf16>, vector<4x16x8xbf16>, vector<4x16x8xf32> -> vector<4x16x8xf32>
    %62 = arith.truncf %61 : vector<4x16x8xf32> to vector<4x16x8xbf16>
    %c0_20 = arith.constant 0 : index
    %c0_21 = arith.constant 0 : index
    %c0_22 = arith.constant 0 : index
    %63 = vector.load %arg5[%c0_20, %c0_21, %c0_22] : memref<4x8x32xbf16, #tpu.memory_space<vmem>>, vector<4x8x32xbf16>
    %cst_23 = arith.constant dense<0.000000e+00> : vector<4x16x32xf32>
    %64 = tpu.matmul %62, %63, %cst_23 {dimension_numbers = #tpu.dot_dimension_numbers<[2], [1], [1], [2], [0, 0, 0, 1, 1, 2], [0], [0]>} : vector<4x16x8xbf16>, vector<4x8x32xbf16>, vector<4x16x32xf32> -> vector<4x16x32xf32>
    %65 = vector.extract_strided_slice %64 {offsets = [0, 0, 0], sizes = [1, 16, 32], strides = [1, 1, 1]} : vector<4x16x32xf32> to vector<1x16x32xf32>
    %66 = vector.shape_cast %65 : vector<1x16x32xf32> to vector<16x32xf32>
    %67 = vector.extract_strided_slice %64 {offsets = [1, 0, 0], sizes = [1, 16, 32], strides = [1, 1, 1]} : vector<4x16x32xf32> to vector<1x16x32xf32>
    %68 = vector.shape_cast %67 : vector<1x16x32xf32> to vector<16x32xf32>
    %69 = arith.addf %66, %68 : vector<16x32xf32>
    %70 = vector.extract_strided_slice %64 {offsets = [2, 0, 0], sizes = [1, 16, 32], strides = [1, 1, 1]} : vector<4x16x32xf32> to vector<1x16x32xf32>
    %71 = vector.shape_cast %70 : vector<1x16x32xf32> to vector<16x32xf32>
    %72 = arith.addf %69, %71 : vector<16x32xf32>
    %73 = vector.extract_strided_slice %64 {offsets = [3, 0, 0], sizes = [1, 16, 32], strides = [1, 1, 1]} : vector<4x16x32xf32> to vector<1x16x32xf32>
    %74 = vector.shape_cast %73 : vector<1x16x32xf32> to vector<16x32xf32>
    %75 = arith.addf %72, %74 : vector<16x32xf32>
    %76 = arith.addf %2, %75 : vector<16x32xf32>
    %77 = vector.broadcast %6 : vector<1x32xf32> to vector<16x32xf32>
    %78 = arith.addf %76, %77 : vector<16x32xf32>
    %cst_24 = arith.constant dense<0.000000e+00> : vector<16xf32>
    %79 = vector.multi_reduction <add>, %78, %cst_24 [1] : vector<16x32xf32> to vector<16xf32>
    %80 = vector.shape_cast %79 : vector<16xf32> to vector<16x1xf32>
    %cst_25 = arith.constant 3.200000e+01 : f32
    %81 = vector.broadcast %cst_25 : f32 to vector<16x1xf32>
    %82 = arith.divf %80, %81 : vector<16x1xf32>
    %83 = vector.broadcast %82 : vector<16x1xf32> to vector<16x32xf32>
    %84 = arith.subf %78, %83 : vector<16x32xf32>
    %85 = arith.mulf %84, %84 : vector<16x32xf32>
    %cst_26 = arith.constant dense<0.000000e+00> : vector<16xf32>
    %86 = vector.multi_reduction <add>, %85, %cst_26 [1] : vector<16x32xf32> to vector<16xf32>
    %87 = vector.shape_cast %86 : vector<16xf32> to vector<16x1xf32>
    %cst_27 = arith.constant 3.200000e+01 : f32
    %88 = vector.broadcast %cst_27 : f32 to vector<16x1xf32>
    %89 = arith.divf %87, %88 : vector<16x1xf32>
    %90 = vector.broadcast %82 : vector<16x1xf32> to vector<16x32xf32>
    %91 = arith.subf %78, %90 : vector<16x32xf32>
    %cst_28 = arith.constant 9.99999974E-6 : f32
    %92 = vector.broadcast %cst_28 : f32 to vector<16x1xf32>
    %93 = arith.addf %89, %92 : vector<16x1xf32>
    %94 = math.rsqrt %93 : vector<16x1xf32>
    %95 = vector.broadcast %94 : vector<16x1xf32> to vector<16x32xf32>
    %96 = arith.mulf %91, %95 : vector<16x32xf32>
    %97 = vector.broadcast %7 : vector<1x32xf32> to vector<16x32xf32>
    %98 = arith.mulf %96, %97 : vector<16x32xf32>
    %99 = vector.broadcast %8 : vector<1x32xf32> to vector<16x32xf32>
    %100 = arith.addf %98, %99 : vector<16x32xf32>
    %c0_29 = arith.constant 0 : index
    %c0_30 = arith.constant 0 : index
    %101 = vector.load %arg6[%c0_29, %c0_30] : memref<33x512xbf16, #tpu.memory_space<vmem>>, vector<33x512xbf16>
    %102 = vector.extract_strided_slice %101 {offsets = [0, 0], sizes = [32, 512], strides = [1, 1]} : vector<33x512xbf16> to vector<32x512xbf16>
    %103 = vector.extract_strided_slice %101 {offsets = [32, 0], sizes = [1, 512], strides = [1, 1]} : vector<33x512xbf16> to vector<1x512xbf16>
    %104 = arith.extf %103 : vector<1x512xbf16> to vector<1x512xf32>
    %105 = arith.truncf %100 : vector<16x32xf32> to vector<16x32xbf16>
    %cst_31 = arith.constant dense<0.000000e+00> : vector<16x512xf32>
    %106 = tpu.matmul %105, %102, %cst_31 {dimension_numbers = #tpu.dot_dimension_numbers<[1], [0], [0], [1], [0, 0, 1, 1], [], []>} : vector<16x32xbf16>, vector<32x512xbf16>, vector<16x512xf32> -> vector<16x512xf32>
    %107 = vector.broadcast %104 : vector<1x512xf32> to vector<16x512xf32>
    %108 = arith.addf %106, %107 : vector<16x512xf32>
    %cst_32 = arith.constant 5.000000e-01 : f32
    %109 = vector.broadcast %cst_32 : f32 to vector<16x512xf32>
    %110 = arith.mulf %109, %108 : vector<16x512xf32>
    %cst_33 = arith.constant 4.471500e-02 : f32
    %111 = vector.broadcast %cst_33 : f32 to vector<16x512xf32>
    %112 = arith.mulf %111, %108 : vector<16x512xf32>
    %113 = arith.mulf %112, %108 : vector<16x512xf32>
    %114 = arith.mulf %113, %108 : vector<16x512xf32>
    %115 = arith.addf %108, %114 : vector<16x512xf32>
    %cst_34 = arith.constant 0.797884583 : f32
    %116 = vector.broadcast %cst_34 : f32 to vector<16x512xf32>
    %117 = arith.mulf %116, %115 : vector<16x512xf32>
    %118 = math.tanh %117 : vector<16x512xf32>
    %cst_35 = arith.constant 1.000000e+00 : f32
    %119 = vector.broadcast %cst_35 : f32 to vector<16x512xf32>
    %120 = arith.addf %119, %118 : vector<16x512xf32>
    %121 = arith.mulf %110, %120 : vector<16x512xf32>
    %122 = arith.truncf %121 : vector<16x512xf32> to vector<16x512xbf16>
    %c0_36 = arith.constant 0 : index
    %c0_37 = arith.constant 0 : index
    %123 = vector.load %arg7[%c0_36, %c0_37] : memref<512x32xbf16, #tpu.memory_space<vmem>>, vector<512x32xbf16>
    %cst_38 = arith.constant dense<0.000000e+00> : vector<16x32xf32>
    %124 = tpu.matmul %122, %123, %cst_38 {dimension_numbers = #tpu.dot_dimension_numbers<[1], [0], [0], [1], [0, 0, 1, 1], [], []>} : vector<16x512xbf16>, vector<512x32xbf16>, vector<16x32xf32> -> vector<16x32xf32>
    %125 = arith.addf %78, %124 : vector<16x32xf32>
    %126 = vector.broadcast %9 : vector<1x32xf32> to vector<16x32xf32>
    %127 = arith.addf %125, %126 : vector<16x32xf32>
    %c0_39 = arith.constant 0 : index
    %c0_40 = arith.constant 0 : index
    %128 = vector.load %arg8[%c0_39, %c0_40] : memref<16x32xf32, #tpu.memory_space<vmem>>, vector<16x32xf32>
    tpu.vector_store %arg8[%c0_39, %c0_40], %127 {strides = array<i32>} : memref<16x32xf32, #tpu.memory_space<vmem>>, vector<16x32xf32>,
    return
  }
}

</mosaic_0001>

<llo_original>
// kernel: transformer_forward.1
$region0: #{transformer_forward.1}
  #allocation0 [shape = 'u32[]', space=smem, size = 0x4, offset = 0x4, fixed_abs, tag = 'smem constant byte address 0x4 - core index']
  #allocation1 [shape = 'u32[144,128]{1,0:T(1,128)}', space=vmem, size = 0x12000, scoped, tag = 'internal scratch']
  %s0 = inlined_call_operand.vmem [shape: f32[16,32], index: 0, kind: input, shape index: {}]
  %s1 = inlined_call_operand.vmem [shape: f32[16,32], index: 1, kind: input, shape index: {}]
  %s2 = inlined_call_operand.vmem [shape: f32[16,16], index: 2, kind: input, shape index: {}]
  %s3 = inlined_call_operand.vmem [shape: f32[8,32], index: 3, kind: input, shape index: {}]
  %s4 = inlined_call_operand.vmem [shape: bf16[12,32,8], index: 4, kind: input, shape index: {}]
  %s5 = inlined_call_operand.vmem [shape: bf16[4,8,32], index: 5, kind: input, shape index: {}]
  %s6 = inlined_call_operand.vmem [shape: bf16[33,512], index: 6, kind: input, shape index: {}]
  %s7 = inlined_call_operand.vmem [shape: bf16[512,32], index: 7, kind: input, shape index: {}]
  %s8 = inlined_call_operand.hbm [shape: f32[16,32], index: 8, kind: output, shape index: {}]
  %s9 = sld [smem:[#allocation0]]
  $region42: #{transformer_forward.1} parent=0
    _
  %s11 = ssub.s32 1, %s9
  %s12 = scalar_select 0, %s11, %s9
  $region1: #{transformer_forward.1} parent=0
    #allocation2 [shape = 'u8[8192]{0}', space=vmem, size = 0x2000, scoped, tag = 'output window, operand 0, single buffered']
    #allocation3 [shape = 's32[1]{0}', space=sflag, size = 0x4, scoped, tag = 'scoped memory for transformer_forward.1']
    %13 = vsyncpa [#allocation3], 0
    // Predicated region
    $region2: #{transformer_forward.1} parent=1 // pred_check
      _
    $region3: #{transformer_forward.1} parent=1 // pred_check_branch
      %15 = sbr.rel (0) target = $region5
    $region4: #{transformer_forward.1} parent=1 // pred_region
      _
    $region5: #{transformer_forward.1} parent=1 // pred_fallthru
      _
    // Predicated region
    $region6: #{transformer_forward.1} parent=1 // pred_check
      _
    $region7: #{transformer_forward.1} parent=1 // pred_check_branch
      %17 = sbr.rel (0) target = $region9
    $region8: #{transformer_forward.1} parent=1 // pred_region
      _
    $region9: #{transformer_forward.1} parent=1 // pred_fallthru
      _
    // Predicated region
    $region10: #{transformer_forward.1} parent=1 // pred_check
      _
    $region11: #{transformer_forward.1} parent=1 // pred_check_branch
      %19 = sbr.rel (0) target = $region13
    $region12: #{transformer_forward.1} parent=1 // pred_region
      _
    $region13: #{transformer_forward.1} parent=1 // pred_fallthru
      _
    // Predicated region
    $region14: #{transformer_forward.1} parent=1 // pred_check
      _
    $region15: #{transformer_forward.1} parent=1 // pred_check_branch
      %21 = sbr.rel (0) target = $region17
    $region16: #{transformer_forward.1} parent=1 // pred_region
      _
    $region17: #{transformer_forward.1} parent=1 // pred_fallthru
      _
    // Predicated region
    $region18: #{transformer_forward.1} parent=1 // pred_check
      _
    $region19: #{transformer_forward.1} parent=1 // pred_check_branch
      %23 = sbr.rel (0) target = $region21
    $region20: #{transformer_forward.1} parent=1 // pred_region
      _
    $region21: #{transformer_forward.1} parent=1 // pred_fallthru
      _
    // Predicated region
    $region22: #{transformer_forward.1} parent=1 // pred_check
      _
    $region23: #{transformer_forward.1} parent=1 // pred_check_branch
      %25 = sbr.rel (0) target = $region25
    $region24: #{transformer_forward.1} parent=1 // pred_region
      _
    $region25: #{transformer_forward.1} parent=1 // pred_fallthru
      _
    // Predicated region
    $region26: #{transformer_forward.1} parent=1 // pred_check
      _
    $region27: #{transformer_forward.1} parent=1 // pred_check_branch
      %27 = sbr.rel (0) target = $region29
    $region28: #{transformer_forward.1} parent=1 // pred_region
      _
    $region29: #{transformer_forward.1} parent=1 // pred_fallthru
      _
    // Predicated region
    $region30: #{transformer_forward.1} parent=1 // pred_check
      _
    $region31: #{transformer_forward.1} parent=1 // pred_check_branch
      %29 = sbr.rel (0) target = $region33
    $region32: #{transformer_forward.1} parent=1 // pred_region
      _
    $region33: #{transformer_forward.1} parent=1 // pred_fallthru
      _
    %v31 = vld [vmem:[%s0] sm:$0xff]
    %v32 = vld [vmem:[%s0 + $0x8] sm:$0xff]
    %v33 = vld [vmem:[%s1] sm:$0xff]
    %v34 = vld [vmem:[%s1 + $0x8] sm:$0xff]
    %v35 = vadd.f32 %v31, %v33
    %v36 = vadd.f32 %v32, %v34
    %v37 = vld [vmem:[%s3] sm:$0xff]
    %vm38 = vcmask 261120
    %v39 = vsel %vm38, %v35, 0.0
    %40 = vadd.xlane.f32.xlu0 %v39
    %v41 = vpop.xlane.xlu0 %40
    %v42 = vsel %vm38, %v36, 0.0
    %43 = vadd.xlane.f32.xlu0 %v42
    %v44 = vpop.xlane.xlu0 %43
    %v45 = vrcp.pop 32.0
    %v46 = vmul.f32 %v41, %v45
    %v47 = vmul.f32 %v44, %v45
    %v48 = vsub.f32 %v35, %v46
    %v49 = vsub.f32 %v36, %v47
    %v50 = vmul.f32 %v48, %v48
    %v51 = vmul.f32 %v49, %v49
    %v52 = vsel %vm38, %v50, 0.0
    %53 = vadd.xlane.f32.xlu0 %v52
    %v54 = vpop.xlane.xlu0 %53
    %v55 = vsel %vm38, %v51, 0.0
    %56 = vadd.xlane.f32.xlu0 %v55
    %v57 = vpop.xlane.xlu0 %56
    %v58 = vmul.f32 %v54, %v45
    %v59 = vmul.f32 %v57, %v45
    %v60 = vadd.f32 %v58, 1e-05
    %v61 = vadd.f32 %v59, 1e-05
    %v62 = vrsqrt.pop %v60
    %v63 = vrsqrt.pop %v61
    %v64 = vmul.f32 %v48, %v62
    %v65 = vmul.f32 %v49, %v63
    %v66 = vlaneseq
    %v67 = vshrl.u32 %v66, 7
    %v68 = vsub.s32 0, %v67
    %v69 = vrot.slane %v37, %v68
    %v70 = vmul.f32 %v64, %v69
    %v71 = vmul.f32 %v65, %v69
    %v72 = vlaneseq
    %v73 = vshrl.u32 %v72, 7
    %v74 = vsub.s32 1, %v73
    %v75 = vrot.slane %v37, %v74
    %v76 = vadd.f32 %v70, %v75
    %v77 = vadd.f32 %v71, %v75
    %v78 = vpack.c.bf16 %v77, %v76
    %v79 = vld [vmem:[%s4] sm:$0xf]
    %v80 = vld [vmem:[%s4 + $0x4] sm:$0xf]
    %v81 = vld [vmem:[%s4 + $0x8] sm:$0xf]
    %v82 = vld [vmem:[%s4 + $0xc] sm:$0xf]
    %v83 = vld [vmem:[%s4 + $0x10] sm:$0xf]
    %v84 = vld [vmem:[%s4 + $0x14] sm:$0xf]
    %v85 = vld [vmem:[%s4 + $0x18] sm:$0xf]
    %v86 = vld [vmem:[%s4 + $0x1c] sm:$0xf]
    %v87 = vld [vmem:[%s4 + $0x20] sm:$0xf]
    %v88 = vld [vmem:[%s4 + $0x24] sm:$0xf]
    %v89 = vld [vmem:[%s4 + $0x28] sm:$0xf]
    %v90 = vld [vmem:[%s4 + $0x2c] sm:$0xf]
    %v91 = vld [vmem:[%s4 + $0x30] sm:$0xf]
    %v92 = vld [vmem:[%s4 + $0x34] sm:$0xf]
    %v93 = vld [vmem:[%s4 + $0x38] sm:$0xf]
    %v94 = vld [vmem:[%s4 + $0x3c] sm:$0xf]
    %v95 = vld [vmem:[%s4 + $0x40] sm:$0xf]
    %v96 = vld [vmem:[%s4 + $0x44] sm:$0xf]
    %v97 = vld [vmem:[%s4 + $0x48] sm:$0xf]
    %v98 = vld [vmem:[%s4 + $0x4c] sm:$0xf]
    %v99 = vld [vmem:[%s4 + $0x50] sm:$0xf]
    %v100 = vld [vmem:[%s4 + $0x54] sm:$0xf]
    %v101 = vld [vmem:[%s4 + $0x58] sm:$0xf]
    %v102 = vld [vmem:[%s4 + $0x5c] sm:$0xf]
    %v103 = vld [vmem:[%s4 + $0x60] sm:$0xf]
    %v104 = vld [vmem:[%s4 + $0x64] sm:$0xf]
    %v105 = vld [vmem:[%s4 + $0x68] sm:$0xf]
    %v106 = vld [vmem:[%s4 + $0x6c] sm:$0xf]
    %v107 = vld [vmem:[%s4 + $0x70] sm:$0xf]
    %v108 = vld [vmem:[%s4 + $0x74] sm:$0xf]
    %v109 = vld [vmem:[%s4 + $0x78] sm:$0xf]
    %v110 = vld [vmem:[%s4 + $0x7c] sm:$0xf]
    %v111 = vld [vmem:[%s4 + $0x80] sm:$0xf]
    %v112 = vld [vmem:[%s4 + $0x84] sm:$0xf]
    %v113 = vld [vmem:[%s4 + $0x88] sm:$0xf]
    %v114 = vld [vmem:[%s4 + $0x8c] sm:$0xf]
    %v115 = vld [vmem:[%s4 + $0x90] sm:$0xf]
    %v116 = vld [vmem:[%s4 + $0x94] sm:$0xf]
    %v117 = vld [vmem:[%s4 + $0x98] sm:$0xf]
    %v118 = vld [vmem:[%s4 + $0x9c] sm:$0xf]
    %v119 = vld [vmem:[%s4 + $0xa0] sm:$0xf]
    %v120 = vld [vmem:[%s4 + $0xa4] sm:$0xf]
    %v121 = vld [vmem:[%s4 + $0xa8] sm:$0xf]
    %v122 = vld [vmem:[%s4 + $0xac] sm:$0xf]
    %v123 = vld [vmem:[%s4 + $0xb0] sm:$0xf]
    %v124 = vld [vmem:[%s4 + $0xb4] sm:$0xf]
    %v125 = vld [vmem:[%s4 + $0xb8] sm:$0xf]
    %v126 = vld [vmem:[%s4 + $0xbc] sm:$0xf]
    %v131 = vunpack.c.l.b16 %v79
    %v132 = vunpack.c.l.b16 %v80
    %v133 = vunpack.c.l.b16 %v81
    %v134 = vunpack.c.l.b16 %v82
    %v135 = vpack.c.b16 %v132, %v131
    %v136 = vpack.c.b16 %v134, %v133
    %v140 = vsel %vm38, %v78, 0
    %142 = vmatprep.subr.bf16.mxu0 0
    %143 = vmatpush1.bf16.msra.mxu0 0
    %144 = vmatprep.subr.bf16.mxu0 0
    %145 = vmatpush1.bf16.msra.mxu0 0
    %146 = vmatprep.subr.bf16.mxu0 0
    %147 = vmatpush1.bf16.msra.mxu0 0
    %148 = vmatprep.subr.bf16.mxu0 0
    %149 = vmatpush1.bf16.msra.mxu0 0
    %150 = vmatprep.subr.bf16.mxu0 0
    %151 = vmatpush1.bf16.msra.mxu0 0
    %152 = vmatprep.subr.bf16.mxu0 0
    %153 = vmatpush1.bf16.msra.mxu0 0
    %154 = vmatprep.subr.bf16.mxu0 0
    %155 = vmatpush1.bf16.msra.mxu0 %v136
    %156 = vmatprep.subr.bf16.mxu0 0
    %157 = vmatpush1.bf16.msra.mxu0 %v135
    %158 = vmatprep.subr.bf16.mxu0 0
    %159 = vmatpush2.bf16.msra.mxu0 0
    %160 = vmatprep.subr.bf16.mxu0 0
    %161 = vmatpush2.bf16.msra.mxu0 0
    %162 = vmatprep.subr.bf16.mxu0 0
    %163 = vmatpush2.bf16.msra.mxu0 0
    %164 = vmatprep.subr.bf16.mxu0 0
    %165 = vmatpush2.bf16.msra.mxu0 0
    %166 = vmatprep.subr.bf16.mxu0 0
    %167 = vmatpush2.bf16.msra.mxu0 0
    %168 = vmatprep.subr.bf16.mxu0 0
    %169 = vmatpush2.bf16.msra.mxu0 0
    %170 = vmatprep.subr.bf16.mxu0 0
    %171 = vmatpush2.bf16.msra.mxu0 0
    %172 = vmatprep.subr.bf16.mxu0 0
    %173 = vmatpush2.bf16.msra.mxu0 0
    %174 = vmatprep.mubr.bf16.mxu0 0
    %175 = vmatmul.mubr.bf16.gmra.mxu0 %v140
    %v176 = vpop.f32.mrf.mxu0
    %v177 = vadd.f32 0.0, %v176
    %v178 = vpop.f32.mrf.mxu0
    %v179 = vpop.f32.mrf.mxu0
    %v180 = vadd.f32 0.0, %v179
    %v181 = vpop.f32.mrf.mxu0
    %182 = vdwg.mxu0
    %v187 = vunpack.c.l.b16 %v83
    %v188 = vunpack.c.l.b16 %v84
    %v189 = vunpack.c.l.b16 %v85
    %v190 = vunpack.c.l.b16 %v86
    %v191 = vpack.c.b16 %v188, %v187
    %v192 = vpack.c.b16 %v190, %v189
    %195 = vmatprep.subr.bf16.mxu0 0
    %196 = vmatpush1.bf16.msra.mxu0 0
    %197 = vmatprep.subr.bf16.mxu0 0
    %198 = vmatpush1.bf16.msra.mxu0 0
    %199 = vmatprep.subr.bf16.mxu0 0
    %200 = vmatpush1.bf16.msra.mxu0 0
    %201 = vmatprep.subr.bf16.mxu0 0
    %202 = vmatpush1.bf16.msra.mxu0 0
    %203 = vmatprep.subr.bf16.mxu0 0
    %204 = vmatpush1.bf16.msra.mxu0 0
    %205 = vmatprep.subr.bf16.mxu0 0
    %206 = vmatpush1.bf16.msra.mxu0 0
    %207 = vmatprep.subr.bf16.mxu0 0
    %208 = vmatpush1.bf16.msra.mxu0 %v192
    %209 = vmatprep.subr.bf16.mxu0 0
    %210 = vmatpush1.bf16.msra.mxu0 %v191
    %211 = vmatprep.subr.bf16.mxu0 0
    %212 = vmatpush2.bf16.msra.mxu0 0
    %213 = vmatprep.subr.bf16.mxu0 0
    %214 = vmatpush2.bf16.msra.mxu0 0
    %215 = vmatprep.subr.bf16.mxu0 0
    %216 = vmatpush2.bf16.msra.mxu0 0
    %217 = vmatprep.subr.bf16.mxu0 0
    %218 = vmatpush2.bf16.msra.mxu0 0
    %219 = vmatprep.subr.bf16.mxu0 0
    %220 = vmatpush2.bf16.msra.mxu0 0
    %221 = vmatprep.subr.bf16.mxu0 0
    %222 = vmatpush2.bf16.msra.mxu0 0
    %223 = vmatprep.subr.bf16.mxu0 0
    %224 = vmatpush2.bf16.msra.mxu0 0
    %225 = vmatprep.subr.bf16.mxu0 0
    %226 = vmatpush2.bf16.msra.mxu0 0
    %227 = vmatprep.mubr.bf16.mxu0 0
    %228 = vmatmul.mubr.bf16.gmra.mxu0 %v140
    %v229 = vpop.f32.mrf.mxu0
    %v230 = vadd.f32 0.0, %v229
    %v231 = vpop.f32.mrf.mxu0
    %v232 = vpop.f32.mrf.mxu0
    %v233 = vadd.f32 0.0, %v232
    %v234 = vpop.f32.mrf.mxu0
    %235 = vdwg.mxu0
    %v240 = vunpack.c.l.b16 %v87
    %v241 = vunpack.c.l.b16 %v88
    %v242 = vunpack.c.l.b16 %v89
    %v243 = vunpack.c.l.b16 %v90
    %v244 = vpack.c.b16 %v241, %v240
    %v245 = vpack.c.b16 %v243, %v242
    %248 = vmatprep.subr.bf16.mxu0 0
    %249 = vmatpush1.bf16.msra.mxu0 0
    %250 = vmatprep.subr.bf16.mxu0 0
    %251 = vmatpush1.bf16.msra.mxu0 0
    %252 = vmatprep.subr.bf16.mxu0 0
    %253 = vmatpush1.bf16.msra.mxu0 0
    %254 = vmatprep.subr.bf16.mxu0 0
    %255 = vmatpush1.bf16.msra.mxu0 0
    %256 = vmatprep.subr.bf16.mxu0 0
    %257 = vmatpush1.bf16.msra.mxu0 0
    %258 = vmatprep.subr.bf16.mxu0 0
    %259 = vmatpush1.bf16.msra.mxu0 0
    %260 = vmatprep.subr.bf16.mxu0 0
    %261 = vmatpush1.bf16.msra.mxu0 %v245
    %262 = vmatprep.subr.bf16.mxu0 0
    %263 = vmatpush1.bf16.msra.mxu0 %v244
    %264 = vmatprep.subr.bf16.mxu0 0
    %265 = vmatpush2.bf16.msra.mxu0 0
    %266 = vmatprep.subr.bf16.mxu0 0
    %267 = vmatpush2.bf16.msra.mxu0 0
    %268 = vmatprep.subr.bf16.mxu0 0
    %269 = vmatpush2.bf16.msra.mxu0 0
    %270 = vmatprep.subr.bf16.mxu0 0
    %271 = vmatpush2.bf16.msra.mxu0 0
    %272 = vmatprep.subr.bf16.mxu0 0
    %273 = vmatpush2.bf16.msra.mxu0 0
    %274 = vmatprep.subr.bf16.mxu0 0
    %275 = vmatpush2.bf16.msra.mxu0 0
    %276 = vmatprep.subr.bf16.mxu0 0
    %277 = vmatpush2.bf16.msra.mxu0 0
    %278 = vmatprep.subr.bf16.mxu0 0
    %279 = vmatpush2.bf16.msra.mxu0 0
    %280 = vmatprep.mubr.bf16.mxu0 0
    %281 = vmatmul.mubr.bf16.gmra.mxu0 %v140
    %v282 = vpop.f32.mrf.mxu0
    %v283 = vadd.f32 0.0, %v282
    %v284 = vpop.f32.mrf.mxu0
    %v285 = vpop.f32.mrf.mxu0
    %v286 = vadd.f32 0.0, %v285
    %v287 = vpop.f32.mrf.mxu0
    %288 = vdwg.mxu0
    %v293 = vunpack.c.l.b16 %v91
    %v294 = vunpack.c.l.b16 %v92
    %v295 = vunpack.c.l.b16 %v93
    %v296 = vunpack.c.l.b16 %v94
    %v297 = vpack.c.b16 %v294, %v293
    %v298 = vpack.c.b16 %v296, %v295
    %301 = vmatprep.subr.bf16.mxu0 0
    %302 = vmatpush1.bf16.msra.mxu0 0
    %303 = vmatprep.subr.bf16.mxu0 0
    %304 = vmatpush1.bf16.msra.mxu0 0
    %305 = vmatprep.subr.bf16.mxu0 0
    %306 = vmatpush1.bf16.msra.mxu0 0
    %307 = vmatprep.subr.bf16.mxu0 0
    %308 = vmatpush1.bf16.msra.mxu0 0
    %309 = vmatprep.subr.bf16.mxu0 0
    %310 = vmatpush1.bf16.msra.mxu0 0
    %311 = vmatprep.subr.bf16.mxu0 0
    %312 = vmatpush1.bf16.msra.mxu0 0
    %313 = vmatprep.subr.bf16.mxu0 0
    %314 = vmatpush1.bf16.msra.mxu0 %v298
    %315 = vmatprep.subr.bf16.mxu0 0
    %316 = vmatpush1.bf16.msra.mxu0 %v297
    %317 = vmatprep.subr.bf16.mxu0 0
    %318 = vmatpush2.bf16.msra.mxu0 0
    %319 = vmatprep.subr.bf16.mxu0 0
    %320 = vmatpush2.bf16.msra.mxu0 0
    %321 = vmatprep.subr.bf16.mxu0 0
    %322 = vmatpush2.bf16.msra.mxu0 0
    %323 = vmatprep.subr.bf16.mxu0 0
    %324 = vmatpush2.bf16.msra.mxu0 0
    %325 = vmatprep.subr.bf16.mxu0 0
    %326 = vmatpush2.bf16.msra.mxu0 0
    %327 = vmatprep.subr.bf16.mxu0 0
    %328 = vmatpush2.bf16.msra.mxu0 0
    %329 = vmatprep.subr.bf16.mxu0 0
    %330 = vmatpush2.bf16.msra.mxu0 0
    %331 = vmatprep.subr.bf16.mxu0 0
    %332 = vmatpush2.bf16.msra.mxu0 0
    %333 = vmatprep.mubr.bf16.mxu0 0
    %334 = vmatmul.mubr.bf16.gmra.mxu0 %v140
    %v335 = vpop.f32.mrf.mxu0
    %v336 = vadd.f32 0.0, %v335
    %v337 = vpop.f32.mrf.mxu0
    %v338 = vpop.f32.mrf.mxu0
    %v339 = vadd.f32 0.0, %v338
    %v340 = vpop.f32.mrf.mxu0
    %341 = vdwg.mxu0
    %v346 = vunpack.c.l.b16 %v95
    %v347 = vunpack.c.l.b16 %v96
    %v348 = vunpack.c.l.b16 %v97
    %v349 = vunpack.c.l.b16 %v98
    %v350 = vpack.c.b16 %v347, %v346
    %v351 = vpack.c.b16 %v349, %v348
    %354 = vmatprep.subr.bf16.mxu0 0
    %355 = vmatpush1.bf16.msra.mxu0 0
    %356 = vmatprep.subr.bf16.mxu0 0
    %357 = vmatpush1.bf16.msra.mxu0 0
    %358 = vmatprep.subr.bf16.mxu0 0
    %359 = vmatpush1.bf16.msra.mxu0 0
    %360 = vmatprep.subr.bf16.mxu0 0
    %361 = vmatpush1.bf16.msra.mxu0 0
    %362 = vmatprep.subr.bf16.mxu0 0
    %363 = vmatpush1.bf16.msra.mxu0 0
    %364 = vmatprep.subr.bf16.mxu0 0
    %365 = vmatpush1.bf16.msra.mxu0 0
    %366 = vmatprep.subr.bf16.mxu0 0
    %367 = vmatpush1.bf16.msra.mxu0 %v351
    %368 = vmatprep.subr.bf16.mxu0 0
    %369 = vmatpush1.bf16.msra.mxu0 %v350
    %370 = vmatprep.subr.bf16.mxu0 0
    %371 = vmatpush2.bf16.msra.mxu0 0
    %372 = vmatprep.subr.bf16.mxu0 0
    %373 = vmatpush2.bf16.msra.mxu0 0
    %374 = vmatprep.subr.bf16.mxu0 0
    %375 = vmatpush2.bf16.msra.mxu0 0
    %376 = vmatprep.subr.bf16.mxu0 0
    %377 = vmatpush2.bf16.msra.mxu0 0
    %378 = vmatprep.subr.bf16.mxu0 0
    %379 = vmatpush2.bf16.msra.mxu0 0
    %380 = vmatprep.subr.bf16.mxu0 0
    %381 = vmatpush2.bf16.msra.mxu0 0
    %382 = vmatprep.subr.bf16.mxu0 0
    %383 = vmatpush2.bf16.msra.mxu0 0
    %384 = vmatprep.subr.bf16.mxu0 0
    %385 = vmatpush2.bf16.msra.mxu0 0
    %386 = vmatprep.mubr.bf16.mxu0 0
    %387 = vmatmul.mubr.bf16.gmra.mxu0 %v140
    %v388 = vpop.f32.mrf.mxu0
    %v389 = vadd.f32 0.0, %v388
    %v390 = vpop.f32.mrf.mxu0
    %v391 = vpop.f32.mrf.mxu0
    %v392 = vadd.f32 0.0, %v391
    %v393 = vpop.f32.mrf.mxu0
    %394 = vdwg.mxu0
    %v399 = vunpack.c.l.b16 %v99
    %v400 = vunpack.c.l.b16 %v100
    %v401 = vunpack.c.l.b16 %v101
    %v402 = vunpack.c.l.b16 %v102
    %v403 = vpack.c.b16 %v400, %v399
    %v404 = vpack.c.b16 %v402, %v401
    %407 = vmatprep.subr.bf16.mxu0 0
    %408 = vmatpush1.bf16.msra.mxu0 0
    %409 = vmatprep.subr.bf16.mxu0 0
    %410 = vmatpush1.bf16.msra.mxu0 0
    %411 = vmatprep.subr.bf16.mxu0 0
    %412 = vmatpush1.bf16.msra.mxu0 0
    %413 = vmatprep.subr.bf16.mxu0 0
    %414 = vmatpush1.bf16.msra.mxu0 0
    %415 = vmatprep.subr.bf16.mxu0 0
    %416 = vmatpush1.bf16.msra.mxu0 0
    %417 = vmatprep.subr.bf16.mxu0 0
    %418 = vmatpush1.bf16.msra.mxu0 0
    %419 = vmatprep.subr.bf16.mxu0 0
    %420 = vmatpush1.bf16.msra.mxu0 %v404
    %421 = vmatprep.subr.bf16.mxu0 0
    %422 = vmatpush1.bf16.msra.mxu0 %v403
    %423 = vmatprep.subr.bf16.mxu0 0
    %424 = vmatpush2.bf16.msra.mxu0 0
    %425 = vmatprep.subr.bf16.mxu0 0
    %426 = vmatpush2.bf16.msra.mxu0 0
    %427 = vmatprep.subr.bf16.mxu0 0
    %428 = vmatpush2.bf16.msra.mxu0 0
    %429 = vmatprep.subr.bf16.mxu0 0
    %430 = vmatpush2.bf16.msra.mxu0 0
    %431 = vmatprep.subr.bf16.mxu0 0
    %432 = vmatpush2.bf16.msra.mxu0 0
    %433 = vmatprep.subr.bf16.mxu0 0
    %434 = vmatpush2.bf16.msra.mxu0 0
    %435 = vmatprep.subr.bf16.mxu0 0
    %436 = vmatpush2.bf16.msra.mxu0 0
    %437 = vmatprep.subr.bf16.mxu0 0
    %438 = vmatpush2.bf16.msra.mxu0 0
    %439 = vmatprep.mubr.bf16.mxu0 0
    %440 = vmatmul.mubr.bf16.gmra.mxu0 %v140
    %v441 = vpop.f32.mrf.mxu0
    %v442 = vadd.f32 0.0, %v441
    %v443 = vpop.f32.mrf.mxu0
    %v444 = vpop.f32.mrf.mxu0
    %v445 = vadd.f32 0.0, %v444
    %v446 = vpop.f32.mrf.mxu0
    %447 = vdwg.mxu0
    %v452 = vunpack.c.l.b16 %v103
    %v453 = vunpack.c.l.b16 %v104
    %v454 = vunpack.c.l.b16 %v105
    %v455 = vunpack.c.l.b16 %v106
    %v456 = vpack.c.b16 %v453, %v452
    %v457 = vpack.c.b16 %v455, %v454
    %460 = vmatprep.subr.bf16.mxu0 0
    %461 = vmatpush1.bf16.msra.mxu0 0
    %462 = vmatprep.subr.bf16.mxu0 0
    %463 = vmatpush1.bf16.msra.mxu0 0
    %464 = vmatprep.subr.bf16.mxu0 0
    %465 = vmatpush1.bf16.msra.mxu0 0
    %466 = vmatprep.subr.bf16.mxu0 0
    %467 = vmatpush1.bf16.msra.mxu0 0
    %468 = vmatprep.subr.bf16.mxu0 0
    %469 = vmatpush1.bf16.msra.mxu0 0
    %470 = vmatprep.subr.bf16.mxu0 0
    %471 = vmatpush1.bf16.msra.mxu0 0
    %472 = vmatprep.subr.bf16.mxu0 0
    %473 = vmatpush1.bf16.msra.mxu0 %v457
    %474 = vmatprep.subr.bf16.mxu0 0
    %475 = vmatpush1.bf16.msra.mxu0 %v456
    %476 = vmatprep.subr.bf16.mxu0 0
    %477 = vmatpush2.bf16.msra.mxu0 0
    %478 = vmatprep.subr.bf16.mxu0 0
    %479 = vmatpush2.bf16.msra.mxu0 0
    %480 = vmatprep.subr.bf16.mxu0 0
    %481 = vmatpush2.bf16.msra.mxu0 0
    %482 = vmatprep.subr.bf16.mxu0 0
    %483 = vmatpush2.bf16.msra.mxu0 0
    %484 = vmatprep.subr.bf16.mxu0 0
    %485 = vmatpush2.bf16.msra.mxu0 0
    %486 = vmatprep.subr.bf16.mxu0 0
    %487 = vmatpush2.bf16.msra.mxu0 0
    %488 = vmatprep.subr.bf16.mxu0 0
    %489 = vmatpush2.bf16.msra.mxu0 0
    %490 = vmatprep.subr.bf16.mxu0 0
    %491 = vmatpush2.bf16.msra.mxu0 0
    %492 = vmatprep.mubr.bf16.mxu0 0
    %493 = vmatmul.mubr.bf16.gmra.mxu0 %v140
    %v494 = vpop.f32.mrf.mxu0
    %v495 = vadd.f32 0.0, %v494
    %v496 = vpop.f32.mrf.mxu0
    %v497 = vpop.f32.mrf.mxu0
    %v498 = vadd.f32 0.0, %v497
    %v499 = vpop.f32.mrf.mxu0
    %500 = vdwg.mxu0
    %v505 = vunpack.c.l.b16 %v107
    %v506 = vunpack.c.l.b16 %v108
    %v507 = vunpack.c.l.b16 %v109
    %v508 = vunpack.c.l.b16 %v110
    %v509 = vpack.c.b16 %v506, %v505
    %v510 = vpack.c.b16 %v508, %v507
    %513 = vmatprep.subr.bf16.mxu0 0
    %514 = vmatpush1.bf16.msra.mxu0 0
    %515 = vmatprep.subr.bf16.mxu0 0
    %516 = vmatpush1.bf16.msra.mxu0 0
    %517 = vmatprep.subr.bf16.mxu0 0
    %518 = vmatpush1.bf16.msra.mxu0 0
    %519 = vmatprep.subr.bf16.mxu0 0
    %520 = vmatpush1.bf16.msra.mxu0 0
    %521 = vmatprep.subr.bf16.mxu0 0
    %522 = vmatpush1.bf16.msra.mxu0 0
    %523 = vmatprep.subr.bf16.mxu0 0
    %524 = vmatpush1.bf16.msra.mxu0 0
    %525 = vmatprep.subr.bf16.mxu0 0
    %526 = vmatpush1.bf16.msra.mxu0 %v510
    %527 = vmatprep.subr.bf16.mxu0 0
    %528 = vmatpush1.bf16.msra.mxu0 %v509
    %529 = vmatprep.subr.bf16.mxu0 0
    %530 = vmatpush2.bf16.msra.mxu0 0
    %531 = vmatprep.subr.bf16.mxu0 0
    %532 = vmatpush2.bf16.msra.mxu0 0
    %533 = vmatprep.subr.bf16.mxu0 0
    %534 = vmatpush2.bf16.msra.mxu0 0
    %535 = vmatprep.subr.bf16.mxu0 0
    %536 = vmatpush2.bf16.msra.mxu0 0
    %537 = vmatprep.subr.bf16.mxu0 0
    %538 = vmatpush2.bf16.msra.mxu0 0
    %539 = vmatprep.subr.bf16.mxu0 0
    %540 = vmatpush2.bf16.msra.mxu0 0
    %541 = vmatprep.subr.bf16.mxu0 0
    %542 = vmatpush2.bf16.msra.mxu0 0
    %543 = vmatprep.subr.bf16.mxu0 0
    %544 = vmatpush2.bf16.msra.mxu0 0
    %545 = vmatprep.mubr.bf16.mxu0 0
    %546 = vmatmul.mubr.bf16.gmra.mxu0 %v140
    %v547 = vpop.f32.mrf.mxu0
    %v548 = vadd.f32 0.0, %v547
    %v549 = vpop.f32.mrf.mxu0
    %v550 = vpop.f32.mrf.mxu0
    %v551 = vadd.f32 0.0, %v550
    %v552 = vpop.f32.mrf.mxu0
    %553 = vdwg.mxu0
    %v558 = vunpack.c.l.b16 %v111
    %v559 = vunpack.c.l.b16 %v112
    %v560 = vunpack.c.l.b16 %v113
    %v561 = vunpack.c.l.b16 %v114
    %v562 = vpack.c.b16 %v559, %v558
    %v563 = vpack.c.b16 %v561, %v560
    %566 = vmatprep.subr.bf16.mxu0 0
    %567 = vmatpush1.bf16.msra.mxu0 0
    %568 = vmatprep.subr.bf16.mxu0 0
    %569 = vmatpush1.bf16.msra.mxu0 0
    %570 = vmatprep.subr.bf16.mxu0 0
    %571 = vmatpush1.bf16.msra.mxu0 0
    %572 = vmatprep.subr.bf16.mxu0 0
    %573 = vmatpush1.bf16.msra.mxu0 0
    %574 = vmatprep.subr.bf16.mxu0 0
    %575 = vmatpush1.bf16.msra.mxu0 0
    %576 = vmatprep.subr.bf16.mxu0 0
    %577 = vmatpush1.bf16.msra.mxu0 0
    %578 = vmatprep.subr.bf16.mxu0 0
    %579 = vmatpush1.bf16.msra.mxu0 %v563
    %580 = vmatprep.subr.bf16.mxu0 0
    %581 = vmatpush1.bf16.msra.mxu0 %v562
    %582 = vmatprep.subr.bf16.mxu0 0
    %583 = vmatpush2.bf16.msra.mxu0 0
    %584 = vmatprep.subr.bf16.mxu0 0
    %585 = vmatpush2.bf16.msra.mxu0 0
    %586 = vmatprep.subr.bf16.mxu0 0
    %587 = vmatpush2.bf16.msra.mxu0 0
    %588 = vmatprep.subr.bf16.mxu0 0
    %589 = vmatpush2.bf16.msra.mxu0 0
    %590 = vmatprep.subr.bf16.mxu0 0
    %591 = vmatpush2.bf16.msra.mxu0 0
    %592 = vmatprep.subr.bf16.mxu0 0
    %593 = vmatpush2.bf16.msra.mxu0 0
    %594 = vmatprep.subr.bf16.mxu0 0
    %595 = vmatpush2.bf16.msra.mxu0 0
    %596 = vmatprep.subr.bf16.mxu0 0
    %597 = vmatpush2.bf16.msra.mxu0 0
    %598 = vmatprep.mubr.bf16.mxu0 0
    %599 = vmatmul.mubr.bf16.gmra.mxu0 %v140
    %v600 = vpop.f32.mrf.mxu0
    %v601 = vadd.f32 0.0, %v600
    %v602 = vpop.f32.mrf.mxu0
    %v603 = vpop.f32.mrf.mxu0
    %v604 = vadd.f32 0.0, %v603
    %v605 = vpop.f32.mrf.mxu0
    %606 = vdwg.mxu0
    %v611 = vunpack.c.l.b16 %v115
    %v612 = vunpack.c.l.b16 %v116
    %v613 = vunpack.c.l.b16 %v117
    %v614 = vunpack.c.l.b16 %v118
    %v615 = vpack.c.b16 %v612, %v611
    %v616 = vpack.c.b16 %v614, %v613
    %619 = vmatprep.subr.bf16.mxu0 0
    %620 = vmatpush1.bf16.msra.mxu0 0
    %621 = vmatprep.subr.bf16.mxu0 0
    %622 = vmatpush1.bf16.msra.mxu0 0
    %623 = vmatprep.subr.bf16.mxu0 0
    %624 = vmatpush1.bf16.msra.mxu0 0
    %625 = vmatprep.subr.bf16.mxu0 0
    %626 = vmatpush1.bf16.msra.mxu0 0
    %627 = vmatprep.subr.bf16.mxu0 0
    %628 = vmatpush1.bf16.msra.mxu0 0
    %629 = vmatprep.subr.bf16.mxu0 0
    %630 = vmatpush1.bf16.msra.mxu0 0
    %631 = vmatprep.subr.bf16.mxu0 0
    %632 = vmatpush1.bf16.msra.mxu0 %v616
    %633 = vmatprep.subr.bf16.mxu0 0
    %634 = vmatpush1.bf16.msra.mxu0 %v615
    %635 = vmatprep.subr.bf16.mxu0 0
    %636 = vmatpush2.bf16.msra.mxu0 0
    %637 = vmatprep.subr.bf16.mxu0 0
    %638 = vmatpush2.bf16.msra.mxu0 0
    %639 = vmatprep.subr.bf16.mxu0 0
    %640 = vmatpush2.bf16.msra.mxu0 0
    %641 = vmatprep.subr.bf16.mxu0 0
    %642 = vmatpush2.bf16.msra.mxu0 0
    %643 = vmatprep.subr.bf16.mxu0 0
    %644 = vmatpush2.bf16.msra.mxu0 0
    %645 = vmatprep.subr.bf16.mxu0 0
    %646 = vmatpush2.bf16.msra.mxu0 0
    %647 = vmatprep.subr.bf16.mxu0 0
    %648 = vmatpush2.bf16.msra.mxu0 0
    %649 = vmatprep.subr.bf16.mxu0 0
    %650 = vmatpush2.bf16.msra.mxu0 0
    %651 = vmatprep.mubr.bf16.mxu0 0
    %652 = vmatmul.mubr.bf16.gmra.mxu0 %v140
    %v653 = vpop.f32.mrf.mxu0
    %v654 = vadd.f32 0.0, %v653
    %v655 = vpop.f32.mrf.mxu0
    %v656 = vpop.f32.mrf.mxu0
    %v657 = vadd.f32 0.0, %v656
    %v658 = vpop.f32.mrf.mxu0
    %659 = vdwg.mxu0
    %v664 = vunpack.c.l.b16 %v119
    %v665 = vunpack.c.l.b16 %v120
    %v666 = vunpack.c.l.b16 %v121
    %v667 = vunpack.c.l.b16 %v122
    %v668 = vpack.c.b16 %v665, %v664
    %v669 = vpack.c.b16 %v667, %v666
    %672 = vmatprep.subr.bf16.mxu0 0
    %673 = vmatpush1.bf16.msra.mxu0 0
    %674 = vmatprep.subr.bf16.mxu0 0
    %675 = vmatpush1.bf16.msra.mxu0 0
    %676 = vmatprep.subr.bf16.mxu0 0
    %677 = vmatpush1.bf16.msra.mxu0 0
    %678 = vmatprep.subr.bf16.mxu0 0
    %679 = vmatpush1.bf16.msra.mxu0 0
    %680 = vmatprep.subr.bf16.mxu0 0
    %681 = vmatpush1.bf16.msra.mxu0 0
    %682 = vmatprep.subr.bf16.mxu0 0
    %683 = vmatpush1.bf16.msra.mxu0 0
    %684 = vmatprep.subr.bf16.mxu0 0
    %685 = vmatpush1.bf16.msra.mxu0 %v669
    %686 = vmatprep.subr.bf16.mxu0 0
    %687 = vmatpush1.bf16.msra.mxu0 %v668
    %688 = vmatprep.subr.bf16.mxu0 0
    %689 = vmatpush2.bf16.msra.mxu0 0
    %690 = vmatprep.subr.bf16.mxu0 0
    %691 = vmatpush2.bf16.msra.mxu0 0
    %692 = vmatprep.subr.bf16.mxu0 0
    %693 = vmatpush2.bf16.msra.mxu0 0
    %694 = vmatprep.subr.bf16.mxu0 0
    %695 = vmatpush2.bf16.msra.mxu0 0
    %696 = vmatprep.subr.bf16.mxu0 0
    %697 = vmatpush2.bf16.msra.mxu0 0
    %698 = vmatprep.subr.bf16.mxu0 0
    %699 = vmatpush2.bf16.msra.mxu0 0
    %700 = vmatprep.subr.bf16.mxu0 0
    %701 = vmatpush2.bf16.msra.mxu0 0
    %702 = vmatprep.subr.bf16.mxu0 0
    %703 = vmatpush2.bf16.msra.mxu0 0
    %704 = vmatprep.mubr.bf16.mxu0 0
    %705 = vmatmul.mubr.bf16.gmra.mxu0 %v140
    %v706 = vpop.f32.mrf.mxu0
    %v707 = vadd.f32 0.0, %v706
    %v708 = vpop.f32.mrf.mxu0
    %v709 = vpop.f32.mrf.mxu0
    %v710 = vadd.f32 0.0, %v709
    %v711 = vpop.f32.mrf.mxu0
    %712 = vdwg.mxu0
    %v717 = vunpack.c.l.b16 %v123
    %v718 = vunpack.c.l.b16 %v124
    %v719 = vunpack.c.l.b16 %v125
    %v720 = vunpack.c.l.b16 %v126
    %v721 = vpack.c.b16 %v718, %v717
    %v722 = vpack.c.b16 %v720, %v719
    %725 = vmatprep.subr.bf16.mxu0 0
    %726 = vmatpush1.bf16.msra.mxu0 0
    %727 = vmatprep.subr.bf16.mxu0 0
    %728 = vmatpush1.bf16.msra.mxu0 0
    %729 = vmatprep.subr.bf16.mxu0 0
    %730 = vmatpush1.bf16.msra.mxu0 0
    %731 = vmatprep.subr.bf16.mxu0 0
    %732 = vmatpush1.bf16.msra.mxu0 0
    %733 = vmatprep.subr.bf16.mxu0 0
    %734 = vmatpush1.bf16.msra.mxu0 0
    %735 = vmatprep.subr.bf16.mxu0 0
    %736 = vmatpush1.bf16.msra.mxu0 0
    %737 = vmatprep.subr.bf16.mxu0 0
    %738 = vmatpush1.bf16.msra.mxu0 %v722
    %739 = vmatprep.subr.bf16.mxu0 0
    %740 = vmatpush1.bf16.msra.mxu0 %v721
    %741 = vmatprep.subr.bf16.mxu0 0
    %742 = vmatpush2.bf16.msra.mxu0 0
    %743 = vmatprep.subr.bf16.mxu0 0
    %744 = vmatpush2.bf16.msra.mxu0 0
    %745 = vmatprep.subr.bf16.mxu0 0
    %746 = vmatpush2.bf16.msra.mxu0 0
    %747 = vmatprep.subr.bf16.mxu0 0
    %748 = vmatpush2.bf16.msra.mxu0 0
    %749 = vmatprep.subr.bf16.mxu0 0
    %750 = vmatpush2.bf16.msra.mxu0 0
    %751 = vmatprep.subr.bf16.mxu0 0
    %752 = vmatpush2.bf16.msra.mxu0 0
    %753 = vmatprep.subr.bf16.mxu0 0
    %754 = vmatpush2.bf16.msra.mxu0 0
    %755 = vmatprep.subr.bf16.mxu0 0
    %756 = vmatpush2.bf16.msra.mxu0 0
    %757 = vmatprep.mubr.bf16.mxu0 0
    %758 = vmatmul.mubr.bf16.gmra.mxu0 %v140
    %v759 = vpop.f32.mrf.mxu0
    %v760 = vadd.f32 0.0, %v759
    %v761 = vpop.f32.mrf.mxu0
    %v762 = vpop.f32.mrf.mxu0
    %v763 = vadd.f32 0.0, %v762
    %v764 = vpop.f32.mrf.mxu0
    %765 = vdwg.mxu0
    %v766 = vpack.c.bf16 %v180, %v177
    %v767 = vpack.c.bf16 %v233, %v230
    %v768 = vpack.c.bf16 %v286, %v283
    %v769 = vpack.c.bf16 %v339, %v336
    %v770 = vpack.c.bf16 %v392, %v389
    %v771 = vpack.c.bf16 %v445, %v442
    %v772 = vpack.c.bf16 %v498, %v495
    %v773 = vpack.c.bf16 %v551, %v548
    %vm774 = vcmask 64512
    %v776 = vsel %vm774, %v766, 0
    %v779 = vsel %vm774, %v770, 0
    %781 = vmatprep.subr.bf16.mxu0 0
    %782 = vmatpush1.bf16.xpose.msra.mxu0 0
    %783 = vmatprep.subr.bf16.mxu0 0
    %784 = vmatpush1.bf16.xpose.msra.mxu0 0
    %785 = vmatprep.subr.bf16.mxu0 0
    %786 = vmatpush1.bf16.xpose.msra.mxu0 0
    %787 = vmatprep.subr.bf16.mxu0 0
    %788 = vmatpush1.bf16.xpose.msra.mxu0 0
    %789 = vmatprep.subr.bf16.mxu0 0
    %790 = vmatpush1.bf16.xpose.msra.mxu0 0
    %791 = vmatprep.subr.bf16.mxu0 0
    %792 = vmatpush1.bf16.xpose.msra.mxu0 0
    %793 = vmatprep.subr.bf16.mxu0 0
    %794 = vmatpush1.bf16.xpose.msra.mxu0 0
    %795 = vmatprep.subr.bf16.mxu0 0
    %796 = vmatpush1.bf16.xpose.msra.mxu0 %v779
    %797 = vmatprep.subr.bf16.mxu0 0
    %798 = vmatpush2.bf16.xpose.msra.mxu0 0
    %799 = vmatprep.subr.bf16.mxu0 0
    %800 = vmatpush2.bf16.xpose.msra.mxu0 0
    %801 = vmatprep.subr.bf16.mxu0 0
    %802 = vmatpush2.bf16.xpose.msra.mxu0 0
    %803 = vmatprep.subr.bf16.mxu0 0
    %804 = vmatpush2.bf16.xpose.msra.mxu0 0
    %805 = vmatprep.subr.bf16.mxu0 0
    %806 = vmatpush2.bf16.xpose.msra.mxu0 0
    %807 = vmatprep.subr.bf16.mxu0 0
    %808 = vmatpush2.bf16.xpose.msra.mxu0 0
    %809 = vmatprep.subr.bf16.mxu0 0
    %810 = vmatpush2.bf16.xpose.msra.mxu0 0
    %811 = vmatprep.subr.bf16.mxu0 0
    %812 = vmatpush2.bf16.xpose.msra.mxu0 0
    %813 = vmatprep.mubr.bf16.mxu0 0
    %814 = vmatmul.mubr.bf16.gmra.mxu0 %v776
    %v815 = vpop.f32.mrf.mxu0
    %v816 = vadd.f32 0.0, %v815
    %v817 = vpop.f32.mrf.mxu0
    %v818 = vpop.f32.mrf.mxu0
    %v819 = vadd.f32 0.0, %v818
    %v820 = vpop.f32.mrf.mxu0
    %821 = vdwg.mxu0
    %v823 = vsel %vm774, %v767, 0
    %v826 = vsel %vm774, %v771, 0
    %828 = vmatprep.subr.bf16.mxu0 0
    %829 = vmatpush1.bf16.xpose.msra.mxu0 0
    %830 = vmatprep.subr.bf16.mxu0 0
    %831 = vmatpush1.bf16.xpose.msra.mxu0 0
    %832 = vmatprep.subr.bf16.mxu0 0
    %833 = vmatpush1.bf16.xpose.msra.mxu0 0
    %834 = vmatprep.subr.bf16.mxu0 0
    %835 = vmatpush1.bf16.xpose.msra.mxu0 0
    %836 = vmatprep.subr.bf16.mxu0 0
    %837 = vmatpush1.bf16.xpose.msra.mxu0 0
    %838 = vmatprep.subr.bf16.mxu0 0
    %839 = vmatpush1.bf16.xpose.msra.mxu0 0
    %840 = vmatprep.subr.bf16.mxu0 0
    %841 = vmatpush1.bf16.xpose.msra.mxu0 0
    %842 = vmatprep.subr.bf16.mxu0 0
    %843 = vmatpush1.bf16.xpose.msra.mxu0 %v826
    %844 = vmatprep.subr.bf16.mxu0 0
    %845 = vmatpush2.bf16.xpose.msra.mxu0 0
    %846 = vmatprep.subr.bf16.mxu0 0
    %847 = vmatpush2.bf16.xpose.msra.mxu0 0
    %848 = vmatprep.subr.bf16.mxu0 0
    %849 = vmatpush2.bf16.xpose.msra.mxu0 0
    %850 = vmatprep.subr.bf16.mxu0 0
    %851 = vmatpush2.bf16.xpose.msra.mxu0 0
    %852 = vmatprep.subr.bf16.mxu0 0
    %853 = vmatpush2.bf16.xpose.msra.mxu0 0
    %854 = vmatprep.subr.bf16.mxu0 0
    %855 = vmatpush2.bf16.xpose.msra.mxu0 0
    %856 = vmatprep.subr.bf16.mxu0 0
    %857 = vmatpush2.bf16.xpose.msra.mxu0 0
    %858 = vmatprep.subr.bf16.mxu0 0
    %859 = vmatpush2.bf16.xpose.msra.mxu0 0
    %860 = vmatprep.mubr.bf16.mxu0 0
    %861 = vmatmul.mubr.bf16.gmra.mxu0 %v823
    %v862 = vpop.f32.mrf.mxu0
    %v863 = vadd.f32 0.0, %v862
    %v864 = vpop.f32.mrf.mxu0
    %v865 = vpop.f32.mrf.mxu0
    %v866 = vadd.f32 0.0, %v865
    %v867 = vpop.f32.mrf.mxu0
    %868 = vdwg.mxu0
    %v870 = vsel %vm774, %v768, 0
    %v873 = vsel %vm774, %v772, 0
    %875 = vmatprep.subr.bf16.mxu0 0
    %876 = vmatpush1.bf16.xpose.msra.mxu0 0
    %877 = vmatprep.subr.bf16.mxu0 0
    %878 = vmatpush1.bf16.xpose.msra.mxu0 0
    %879 = vmatprep.subr.bf16.mxu0 0
    %880 = vmatpush1.bf16.xpose.msra.mxu0 0
    %881 = vmatprep.subr.bf16.mxu0 0
    %882 = vmatpush1.bf16.xpose.msra.mxu0 0
    %883 = vmatprep.subr.bf16.mxu0 0
    %884 = vmatpush1.bf16.xpose.msra.mxu0 0
    %885 = vmatprep.subr.bf16.mxu0 0
    %886 = vmatpush1.bf16.xpose.msra.mxu0 0
    %887 = vmatprep.subr.bf16.mxu0 0
    %888 = vmatpush1.bf16.xpose.msra.mxu0 0
    %889 = vmatprep.subr.bf16.mxu0 0
    %890 = vmatpush1.bf16.xpose.msra.mxu0 %v873
    %891 = vmatprep.subr.bf16.mxu0 0
    %892 = vmatpush2.bf16.xpose.msra.mxu0 0
    %893 = vmatprep.subr.bf16.mxu0 0
    %894 = vmatpush2.bf16.xpose.msra.mxu0 0
    %895 = vmatprep.subr.bf16.mxu0 0
    %896 = vmatpush2.bf16.xpose.msra.mxu0 0
    %897 = vmatprep.subr.bf16.mxu0 0
    %898 = vmatpush2.bf16.xpose.msra.mxu0 0
    %899 = vmatprep.subr.bf16.mxu0 0
    %900 = vmatpush2.bf16.xpose.msra.mxu0 0
    %901 = vmatprep.subr.bf16.mxu0 0
    %902 = vmatpush2.bf16.xpose.msra.mxu0 0
    %903 = vmatprep.subr.bf16.mxu0 0
    %904 = vmatpush2.bf16.xpose.msra.mxu0 0
    %905 = vmatprep.subr.bf16.mxu0 0
    %906 = vmatpush2.bf16.xpose.msra.mxu0 0
    %907 = vmatprep.mubr.bf16.mxu0 0
    %908 = vmatmul.mubr.bf16.gmra.mxu0 %v870
    %v909 = vpop.f32.mrf.mxu0
    %v910 = vadd.f32 0.0, %v909
    %v911 = vpop.f32.mrf.mxu0
    %v912 = vpop.f32.mrf.mxu0
    %v913 = vadd.f32 0.0, %v912
    %v914 = vpop.f32.mrf.mxu0
    %915 = vdwg.mxu0
    %v917 = vsel %vm774, %v769, 0
    %v920 = vsel %vm774, %v773, 0
    %922 = vmatprep.subr.bf16.mxu0 0
    %923 = vmatpush1.bf16.xpose.msra.mxu0 0
    %924 = vmatprep.subr.bf16.mxu0 0
    %925 = vmatpush1.bf16.xpose.msra.mxu0 0
    %926 = vmatprep.subr.bf16.mxu0 0
    %927 = vmatpush1.bf16.xpose.msra.mxu0 0
    %928 = vmatprep.subr.bf16.mxu0 0
    %929 = vmatpush1.bf16.xpose.msra.mxu0 0
    %930 = vmatprep.subr.bf16.mxu0 0
    %931 = vmatpush1.bf16.xpose.msra.mxu0 0
    %932 = vmatprep.subr.bf16.mxu0 0
    %933 = vmatpush1.bf16.xpose.msra.mxu0 0
    %934 = vmatprep.subr.bf16.mxu0 0
    %935 = vmatpush1.bf16.xpose.msra.mxu0 0
    %936 = vmatprep.subr.bf16.mxu0 0
    %937 = vmatpush1.bf16.xpose.msra.mxu0 %v920
    %938 = vmatprep.subr.bf16.mxu0 0
    %939 = vmatpush2.bf16.xpose.msra.mxu0 0
    %940 = vmatprep.subr.bf16.mxu0 0
    %941 = vmatpush2.bf16.xpose.msra.mxu0 0
    %942 = vmatprep.subr.bf16.mxu0 0
    %943 = vmatpush2.bf16.xpose.msra.mxu0 0
    %944 = vmatprep.subr.bf16.mxu0 0
    %945 = vmatpush2.bf16.xpose.msra.mxu0 0
    %946 = vmatprep.subr.bf16.mxu0 0
    %947 = vmatpush2.bf16.xpose.msra.mxu0 0
    %948 = vmatprep.subr.bf16.mxu0 0
    %949 = vmatpush2.bf16.xpose.msra.mxu0 0
    %950 = vmatprep.subr.bf16.mxu0 0
    %951 = vmatpush2.bf16.xpose.msra.mxu0 0
    %952 = vmatprep.subr.bf16.mxu0 0
    %953 = vmatpush2.bf16.xpose.msra.mxu0 0
    %954 = vmatprep.mubr.bf16.mxu0 0
    %955 = vmatmul.mubr.bf16.gmra.mxu0 %v917
    %v956 = vpop.f32.mrf.mxu0
    %v957 = vadd.f32 0.0, %v956
    %v958 = vpop.f32.mrf.mxu0
    %v959 = vpop.f32.mrf.mxu0
    %v960 = vadd.f32 0.0, %v959
    %v961 = vpop.f32.mrf.mxu0
    %962 = vdwg.mxu0
    %v963 = vmul.f32 %v816, 0.35355338
    %v964 = vmul.f32 %v819, 0.35355338
    %v965 = vmul.f32 %v863, 0.35355338
    %v966 = vmul.f32 %v866, 0.35355338
    %v967 = vmul.f32 %v910, 0.35355338
    %v968 = vmul.f32 %v913, 0.35355338
    %v969 = vmul.f32 %v957, 0.35355338
    %v970 = vmul.f32 %v960, 0.35355338
    %v971 = vld [vmem:[%s2] sm:$0xff]
    %v972 = vld [vmem:[%s2 + $0x8] sm:$0xff]
    %v973 = vadd.f32 %v963, %v971
    %v974 = vadd.f32 %v964, %v972
    %v975 = vadd.f32 %v965, %v971
    %v976 = vadd.f32 %v966, %v972
    %v977 = vadd.f32 %v967, %v971
    %v978 = vadd.f32 %v968, %v972
    %v979 = vadd.f32 %v969, %v971
    %v980 = vadd.f32 %v970, %v972
    %vm981 = vcmask 130048
    %v982 = vsel %vm981, %v973, -inf
    %983 = vmax.xlane.f32.xlu0 %v982
    %v984 = vpop.xlane.xlu0 %983
    %v985 = vsel %vm981, %v974, -inf
    %986 = vmax.xlane.f32.xlu0 %v985
    %v987 = vpop.xlane.xlu0 %986
    %v988 = vsel %vm981, %v975, -inf
    %989 = vmax.xlane.f32.xlu0 %v988
    %v990 = vpop.xlane.xlu0 %989
    %v991 = vsel %vm981, %v976, -inf
    %992 = vmax.xlane.f32.xlu0 %v991
    %v993 = vpop.xlane.xlu0 %992
    %v994 = vsel %vm981, %v977, -inf
    %995 = vmax.xlane.f32.xlu0 %v994
    %v996 = vpop.xlane.xlu0 %995
    %v997 = vsel %vm981, %v978, -inf
    %998 = vmax.xlane.f32.xlu0 %v997
    %v999 = vpop.xlane.xlu0 %998
    %v1000 = vsel %vm981, %v979, -inf
    %1001 = vmax.xlane.f32.xlu0 %v1000
    %v1002 = vpop.xlane.xlu0 %1001
    %v1003 = vsel %vm981, %v980, -inf
    %1004 = vmax.xlane.f32.xlu0 %v1003
    %v1005 = vpop.xlane.xlu0 %1004
    %v1006 = vsub.f32 %v973, %v984
    %v1007 = vsub.f32 %v974, %v987
    %v1008 = vsub.f32 %v975, %v990
    %v1009 = vsub.f32 %v976, %v993
    %v1010 = vsub.f32 %v977, %v996
    %v1011 = vsub.f32 %v978, %v999
    %v1012 = vsub.f32 %v979, %v1002
    %v1013 = vsub.f32 %v980, %v1005
    %v1014 = vmul.f32 %v1006, 1.442695
    %v1015 = vpow.pop %v1014
    %v1016 = vmul.f32 %v1007, 1.442695
    %v1017 = vpow.pop %v1016
    %v1018 = vmul.f32 %v1008, 1.442695
    %v1019 = vpow.pop %v1018
    %v1020 = vmul.f32 %v1009, 1.442695
    %v1021 = vpow.pop %v1020
    %v1022 = vmul.f32 %v1010, 1.442695
    %v1023 = vpow.pop %v1022
    %v1024 = vmul.f32 %v1011, 1.442695
    %v1025 = vpow.pop %v1024
    %v1026 = vmul.f32 %v1012, 1.442695
    %v1027 = vpow.pop %v1026
    %v1028 = vmul.f32 %v1013, 1.442695
    %v1029 = vpow.pop %v1028
    %v1030 = vsel %vm981, %v1015, 0.0
    %1031 = vadd.xlane.f32.xlu0 %v1030
    %v1032 = vpop.xlane.xlu0 %1031
    %v1033 = vsel %vm981, %v1017, 0.0
    %1034 = vadd.xlane.f32.xlu0 %v1033
    %v1035 = vpop.xlane.xlu0 %1034
    %v1036 = vsel %vm981, %v1019, 0.0
    %1037 = vadd.xlane.f32.xlu0 %v1036
    %v1038 = vpop.xlane.xlu0 %1037
    %v1039 = vsel %vm981, %v1021, 0.0
    %1040 = vadd.xlane.f32.xlu0 %v1039
    %v1041 = vpop.xlane.xlu0 %1040
    %v1042 = vsel %vm981, %v1023, 0.0
    %1043 = vadd.xlane.f32.xlu0 %v1042
    %v1044 = vpop.xlane.xlu0 %1043
    %v1045 = vsel %vm981, %v1025, 0.0
    %1046 = vadd.xlane.f32.xlu0 %v1045
    %v1047 = vpop.xlane.xlu0 %1046
    %v1048 = vsel %vm981, %v1027, 0.0
    %1049 = vadd.xlane.f32.xlu0 %v1048
    %v1050 = vpop.xlane.xlu0 %1049
    %v1051 = vsel %vm981, %v1029, 0.0
    %1052 = vadd.xlane.f32.xlu0 %v1051
    %v1053 = vpop.xlane.xlu0 %1052
    %v1054 = vrcp.pop %v1032
    %v1055 = vrcp.pop %v1035
    %v1056 = vrcp.pop %v1038
    %v1057 = vrcp.pop %v1041
    %v1058 = vrcp.pop %v1044
    %v1059 = vrcp.pop %v1047
    %v1060 = vrcp.pop %v1050
    %v1061 = vrcp.pop %v1053
    %v1062 = vmul.f32 %v1015, %v1054
    %v1063 = vmul.f32 %v1017, %v1055
    %v1064 = vmul.f32 %v1019, %v1056
    %v1065 = vmul.f32 %v1021, %v1057
    %v1066 = vmul.f32 %v1023, %v1058
    %v1067 = vmul.f32 %v1025, %v1059
    %v1068 = vmul.f32 %v1027, %v1060
    %v1069 = vmul.f32 %v1029, %v1061
    %v1070 = vpack.c.bf16 %v1063, %v1062
    %v1071 = vpack.c.bf16 %v1065, %v1064
    %v1072 = vpack.c.bf16 %v1067, %v1066
    %v1073 = vpack.c.bf16 %v1069, %v1068
    %v1074 = vpack.c.bf16 %v604, %v601
    %v1075 = vpack.c.bf16 %v657, %v654
    %v1076 = vpack.c.bf16 %v710, %v707
    %v1077 = vpack.c.bf16 %v763, %v760
    %v1079 = vsel %vm981, %v1070, 0
    %1081 = vmatprep.subr.bf16.mxu0 0
    %1082 = vmatpush1.bf16.msra.mxu0 0
    %1083 = vmatprep.subr.bf16.mxu0 0
    %1084 = vmatpush1.bf16.msra.mxu0 0
    %1085 = vmatprep.subr.bf16.mxu0 0
    %1086 = vmatpush1.bf16.msra.mxu0 0
    %1087 = vmatprep.subr.bf16.mxu0 0
    %1088 = vmatpush1.bf16.msra.mxu0 0
    %1089 = vmatprep.subr.bf16.mxu0 0
    %1090 = vmatpush1.bf16.msra.mxu0 0
    %1091 = vmatprep.subr.bf16.mxu0 0
    %1092 = vmatpush1.bf16.msra.mxu0 0
    %1093 = vmatprep.subr.bf16.mxu0 0
    %1094 = vmatpush1.bf16.msra.mxu0 0
    %1095 = vmatprep.subr.bf16.mxu0 0
    %1096 = vmatpush1.bf16.msra.mxu0 %v1074
    %1097 = vmatprep.subr.bf16.mxu0 0
    %1098 = vmatpush2.bf16.msra.mxu0 0
    %1099 = vmatprep.subr.bf16.mxu0 0
    %1100 = vmatpush2.bf16.msra.mxu0 0
    %1101 = vmatprep.subr.bf16.mxu0 0
    %1102 = vmatpush2.bf16.msra.mxu0 0
    %1103 = vmatprep.subr.bf16.mxu0 0
    %1104 = vmatpush2.bf16.msra.mxu0 0
    %1105 = vmatprep.subr.bf16.mxu0 0
    %1106 = vmatpush2.bf16.msra.mxu0 0
    %1107 = vmatprep.subr.bf16.mxu0 0
    %1108 = vmatpush2.bf16.msra.mxu0 0
    %1109 = vmatprep.subr.bf16.mxu0 0
    %1110 = vmatpush2.bf16.msra.mxu0 0
    %1111 = vmatprep.subr.bf16.mxu0 0
    %1112 = vmatpush2.bf16.msra.mxu0 0
    %1113 = vmatprep.mubr.bf16.mxu0 0
    %1114 = vmatmul.mubr.bf16.gmra.mxu0 %v1079
    %v1115 = vpop.f32.mrf.mxu0
    %v1116 = vadd.f32 0.0, %v1115
    %v1117 = vpop.f32.mrf.mxu0
    %v1118 = vpop.f32.mrf.mxu0
    %v1119 = vadd.f32 0.0, %v1118
    %v1120 = vpop.f32.mrf.mxu0
    %1121 = vdwg.mxu0
    %v1123 = vsel %vm981, %v1071, 0
    %1125 = vmatprep.subr.bf16.mxu0 0
    %1126 = vmatpush1.bf16.msra.mxu0 0
    %1127 = vmatprep.subr.bf16.mxu0 0
    %1128 = vmatpush1.bf16.msra.mxu0 0
    %1129 = vmatprep.subr.bf16.mxu0 0
    %1130 = vmatpush1.bf16.msra.mxu0 0
    %1131 = vmatprep.subr.bf16.mxu0 0
    %1132 = vmatpush1.bf16.msra.mxu0 0
    %1133 = vmatprep.subr.bf16.mxu0 0
    %1134 = vmatpush1.bf16.msra.mxu0 0
    %1135 = vmatprep.subr.bf16.mxu0 0
    %1136 = vmatpush1.bf16.msra.mxu0 0
    %1137 = vmatprep.subr.bf16.mxu0 0
    %1138 = vmatpush1.bf16.msra.mxu0 0
    %1139 = vmatprep.subr.bf16.mxu0 0
    %1140 = vmatpush1.bf16.msra.mxu0 %v1075
    %1141 = vmatprep.subr.bf16.mxu0 0
    %1142 = vmatpush2.bf16.msra.mxu0 0
    %1143 = vmatprep.subr.bf16.mxu0 0
    %1144 = vmatpush2.bf16.msra.mxu0 0
    %1145 = vmatprep.subr.bf16.mxu0 0
    %1146 = vmatpush2.bf16.msra.mxu0 0
    %1147 = vmatprep.subr.bf16.mxu0 0
    %1148 = vmatpush2.bf16.msra.mxu0 0
    %1149 = vmatprep.subr.bf16.mxu0 0
    %1150 = vmatpush2.bf16.msra.mxu0 0
    %1151 = vmatprep.subr.bf16.mxu0 0
    %1152 = vmatpush2.bf16.msra.mxu0 0
    %1153 = vmatprep.subr.bf16.mxu0 0
    %1154 = vmatpush2.bf16.msra.mxu0 0
    %1155 = vmatprep.subr.bf16.mxu0 0
    %1156 = vmatpush2.bf16.msra.mxu0 0
    %1157 = vmatprep.mubr.bf16.mxu0 0
    %1158 = vmatmul.mubr.bf16.gmra.mxu0 %v1123
    %v1159 = vpop.f32.mrf.mxu0
    %v1160 = vadd.f32 0.0, %v1159
    %v1161 = vpop.f32.mrf.mxu0
    %v1162 = vpop.f32.mrf.mxu0
    %v1163 = vadd.f32 0.0, %v1162
    %v1164 = vpop.f32.mrf.mxu0
    %1165 = vdwg.mxu0
    %v1167 = vsel %vm981, %v1072, 0
    %1169 = vmatprep.subr.bf16.mxu0 0
    %1170 = vmatpush1.bf16.msra.mxu0 0
    %1171 = vmatprep.subr.bf16.mxu0 0
    %1172 = vmatpush1.bf16.msra.mxu0 0
    %1173 = vmatprep.subr.bf16.mxu0 0
    %1174 = vmatpush1.bf16.msra.mxu0 0
    %1175 = vmatprep.subr.bf16.mxu0 0
    %1176 = vmatpush1.bf16.msra.mxu0 0
    %1177 = vmatprep.subr.bf16.mxu0 0
    %1178 = vmatpush1.bf16.msra.mxu0 0
    %1179 = vmatprep.subr.bf16.mxu0 0
    %1180 = vmatpush1.bf16.msra.mxu0 0
    %1181 = vmatprep.subr.bf16.mxu0 0
    %1182 = vmatpush1.bf16.msra.mxu0 0
    %1183 = vmatprep.subr.bf16.mxu0 0
    %1184 = vmatpush1.bf16.msra.mxu0 %v1076
    %1185 = vmatprep.subr.bf16.mxu0 0
    %1186 = vmatpush2.bf16.msra.mxu0 0
    %1187 = vmatprep.subr.bf16.mxu0 0
    %1188 = vmatpush2.bf16.msra.mxu0 0
    %1189 = vmatprep.subr.bf16.mxu0 0
    %1190 = vmatpush2.bf16.msra.mxu0 0
    %1191 = vmatprep.subr.bf16.mxu0 0
    %1192 = vmatpush2.bf16.msra.mxu0 0
    %1193 = vmatprep.subr.bf16.mxu0 0
    %1194 = vmatpush2.bf16.msra.mxu0 0
    %1195 = vmatprep.subr.bf16.mxu0 0
    %1196 = vmatpush2.bf16.msra.mxu0 0
    %1197 = vmatprep.subr.bf16.mxu0 0
    %1198 = vmatpush2.bf16.msra.mxu0 0
    %1199 = vmatprep.subr.bf16.mxu0 0
    %1200 = vmatpush2.bf16.msra.mxu0 0
    %1201 = vmatprep.mubr.bf16.mxu0 0
    %1202 = vmatmul.mubr.bf16.gmra.mxu0 %v1167
    %v1203 = vpop.f32.mrf.mxu0
    %v1204 = vadd.f32 0.0, %v1203
    %v1205 = vpop.f32.mrf.mxu0
    %v1206 = vpop.f32.mrf.mxu0
    %v1207 = vadd.f32 0.0, %v1206
    %v1208 = vpop.f32.mrf.mxu0
    %1209 = vdwg.mxu0
    %v1211 = vsel %vm981, %v1073, 0
    %1213 = vmatprep.subr.bf16.mxu0 0
    %1214 = vmatpush1.bf16.msra.mxu0 0
    %1215 = vmatprep.subr.bf16.mxu0 0
    %1216 = vmatpush1.bf16.msra.mxu0 0
    %1217 = vmatprep.subr.bf16.mxu0 0
    %1218 = vmatpush1.bf16.msra.mxu0 0
    %1219 = vmatprep.subr.bf16.mxu0 0
    %1220 = vmatpush1.bf16.msra.mxu0 0
    %1221 = vmatprep.subr.bf16.mxu0 0
    %1222 = vmatpush1.bf16.msra.mxu0 0
    %1223 = vmatprep.subr.bf16.mxu0 0
    %1224 = vmatpush1.bf16.msra.mxu0 0
    %1225 = vmatprep.subr.bf16.mxu0 0
    %1226 = vmatpush1.bf16.msra.mxu0 0
    %1227 = vmatprep.subr.bf16.mxu0 0
    %1228 = vmatpush1.bf16.msra.mxu0 %v1077
    %1229 = vmatprep.subr.bf16.mxu0 0
    %1230 = vmatpush2.bf16.msra.mxu0 0
    %1231 = vmatprep.subr.bf16.mxu0 0
    %1232 = vmatpush2.bf16.msra.mxu0 0
    %1233 = vmatprep.subr.bf16.mxu0 0
    %1234 = vmatpush2.bf16.msra.mxu0 0
    %1235 = vmatprep.subr.bf16.mxu0 0
    %1236 = vmatpush2.bf16.msra.mxu0 0
    %1237 = vmatprep.subr.bf16.mxu0 0
    %1238 = vmatpush2.bf16.msra.mxu0 0
    %1239 = vmatprep.subr.bf16.mxu0 0
    %1240 = vmatpush2.bf16.msra.mxu0 0
    %1241 = vmatprep.subr.bf16.mxu0 0
    %1242 = vmatpush2.bf16.msra.mxu0 0
    %1243 = vmatprep.subr.bf16.mxu0 0
    %1244 = vmatpush2.bf16.msra.mxu0 0
    %1245 = vmatprep.mubr.bf16.mxu0 0
    %1246 = vmatmul.mubr.bf16.gmra.mxu0 %v1211
    %v1247 = vpop.f32.mrf.mxu0
    %v1248 = vadd.f32 0.0, %v1247
    %v1249 = vpop.f32.mrf.mxu0
    %v1250 = vpop.f32.mrf.mxu0
    %v1251 = vadd.f32 0.0, %v1250
    %v1252 = vpop.f32.mrf.mxu0
    %1253 = vdwg.mxu0
    %v1254 = vpack.c.bf16 %v1119, %v1116
    %v1255 = vpack.c.bf16 %v1163, %v1160
    %v1256 = vpack.c.bf16 %v1207, %v1204
    %v1257 = vpack.c.bf16 %v1251, %v1248
    %v1258 = vld [vmem:[%s5] sm:$0xf]
    %v1259 = vld [vmem:[%s5 + $0x4] sm:$0xf]
    %v1260 = vld [vmem:[%s5 + $0x8] sm:$0xf]
    %v1261 = vld [vmem:[%s5 + $0xc] sm:$0xf]
    %v1263 = vsel %vm774, %v1254, 0
    %vm1265 = vcmask 1043456
    %v1267 = vsel %vm1265, %v1258, 0
    %1269 = vmatprep.subr.bf16.mxu0 0
    %1270 = vmatpush1.bf16.msra.mxu0 0
    %1271 = vmatprep.subr.bf16.mxu0 0
    %1272 = vmatpush1.bf16.msra.mxu0 0
    %1273 = vmatprep.subr.bf16.mxu0 0
    %1274 = vmatpush1.bf16.msra.mxu0 0
    %1275 = vmatprep.subr.bf16.mxu0 0
    %1276 = vmatpush1.bf16.msra.mxu0 0
    %1277 = vmatprep.subr.bf16.mxu0 0
    %1278 = vmatpush1.bf16.msra.mxu0 0
    %1279 = vmatprep.subr.bf16.mxu0 0
    %1280 = vmatpush1.bf16.msra.mxu0 0
    %1281 = vmatprep.subr.bf16.mxu0 0
    %1282 = vmatpush1.bf16.msra.mxu0 0
    %1283 = vmatprep.subr.bf16.mxu0 0
    %1284 = vmatpush1.bf16.msra.mxu0 %v1267
    %1285 = vmatprep.subr.bf16.mxu0 0
    %1286 = vmatpush2.bf16.msra.mxu0 0
    %1287 = vmatprep.subr.bf16.mxu0 0
    %1288 = vmatpush2.bf16.msra.mxu0 0
    %1289 = vmatprep.subr.bf16.mxu0 0
    %1290 = vmatpush2.bf16.msra.mxu0 0
    %1291 = vmatprep.subr.bf16.mxu0 0
    %1292 = vmatpush2.bf16.msra.mxu0 0
    %1293 = vmatprep.subr.bf16.mxu0 0
    %1294 = vmatpush2.bf16.msra.mxu0 0
    %1295 = vmatprep.subr.bf16.mxu0 0
    %1296 = vmatpush2.bf16.msra.mxu0 0
    %1297 = vmatprep.subr.bf16.mxu0 0
    %1298 = vmatpush2.bf16.msra.mxu0 0
    %1299 = vmatprep.subr.bf16.mxu0 0
    %1300 = vmatpush2.bf16.msra.mxu0 0
    %1301 = vmatprep.mubr.bf16.mxu0 0
    %1302 = vmatmul.mubr.bf16.gmra.mxu0 %v1263
    %v1303 = vpop.f32.mrf.mxu0
    %v1304 = vadd.f32 0.0, %v1303
    %v1305 = vpop.f32.mrf.mxu0
    %v1306 = vpop.f32.mrf.mxu0
    %v1307 = vadd.f32 0.0, %v1306
    %v1308 = vpop.f32.mrf.mxu0
    %1309 = vdwg.mxu0
    %v1311 = vsel %vm774, %v1255, 0
    %v1314 = vsel %vm1265, %v1259, 0
    %1316 = vmatprep.subr.bf16.mxu0 0
    %1317 = vmatpush1.bf16.msra.mxu0 0
    %1318 = vmatprep.subr.bf16.mxu0 0
    %1319 = vmatpush1.bf16.msra.mxu0 0
    %1320 = vmatprep.subr.bf16.mxu0 0
    %1321 = vmatpush1.bf16.msra.mxu0 0
    %1322 = vmatprep.subr.bf16.mxu0 0
    %1323 = vmatpush1.bf16.msra.mxu0 0
    %1324 = vmatprep.subr.bf16.mxu0 0
    %1325 = vmatpush1.bf16.msra.mxu0 0
    %1326 = vmatprep.subr.bf16.mxu0 0
    %1327 = vmatpush1.bf16.msra.mxu0 0
    %1328 = vmatprep.subr.bf16.mxu0 0
    %1329 = vmatpush1.bf16.msra.mxu0 0
    %1330 = vmatprep.subr.bf16.mxu0 0
    %1331 = vmatpush1.bf16.msra.mxu0 %v1314
    %1332 = vmatprep.subr.bf16.mxu0 0
    %1333 = vmatpush2.bf16.msra.mxu0 0
    %1334 = vmatprep.subr.bf16.mxu0 0
    %1335 = vmatpush2.bf16.msra.mxu0 0
    %1336 = vmatprep.subr.bf16.mxu0 0
    %1337 = vmatpush2.bf16.msra.mxu0 0
    %1338 = vmatprep.subr.bf16.mxu0 0
    %1339 = vmatpush2.bf16.msra.mxu0 0
    %1340 = vmatprep.subr.bf16.mxu0 0
    %1341 = vmatpush2.bf16.msra.mxu0 0
    %1342 = vmatprep.subr.bf16.mxu0 0
    %1343 = vmatpush2.bf16.msra.mxu0 0
    %1344 = vmatprep.subr.bf16.mxu0 0
    %1345 = vmatpush2.bf16.msra.mxu0 0
    %1346 = vmatprep.subr.bf16.mxu0 0
    %1347 = vmatpush2.bf16.msra.mxu0 0
    %1348 = vmatprep.mubr.bf16.mxu0 0
    %1349 = vmatmul.mubr.bf16.gmra.mxu0 %v1311
    %v1350 = vpop.f32.mrf.mxu0
    %v1351 = vadd.f32 0.0, %v1350
    %v1352 = vpop.f32.mrf.mxu0
    %v1353 = vpop.f32.mrf.mxu0
    %v1354 = vadd.f32 0.0, %v1353
    %v1355 = vpop.f32.mrf.mxu0
    %1356 = vdwg.mxu0
    %v1358 = vsel %vm774, %v1256, 0
    %v1361 = vsel %vm1265, %v1260, 0
    %1363 = vmatprep.subr.bf16.mxu0 0
    %1364 = vmatpush1.bf16.msra.mxu0 0
    %1365 = vmatprep.subr.bf16.mxu0 0
    %1366 = vmatpush1.bf16.msra.mxu0 0
    %1367 = vmatprep.subr.bf16.mxu0 0
    %1368 = vmatpush1.bf16.msra.mxu0 0
    %1369 = vmatprep.subr.bf16.mxu0 0
    %1370 = vmatpush1.bf16.msra.mxu0 0
    %1371 = vmatprep.subr.bf16.mxu0 0
    %1372 = vmatpush1.bf16.msra.mxu0 0
    %1373 = vmatprep.subr.bf16.mxu0 0
    %1374 = vmatpush1.bf16.msra.mxu0 0
    %1375 = vmatprep.subr.bf16.mxu0 0
    %1376 = vmatpush1.bf16.msra.mxu0 0
    %1377 = vmatprep.subr.bf16.mxu0 0
    %1378 = vmatpush1.bf16.msra.mxu0 %v1361
    %1379 = vmatprep.subr.bf16.mxu0 0
    %1380 = vmatpush2.bf16.msra.mxu0 0
    %1381 = vmatprep.subr.bf16.mxu0 0
    %1382 = vmatpush2.bf16.msra.mxu0 0
    %1383 = vmatprep.subr.bf16.mxu0 0
    %1384 = vmatpush2.bf16.msra.mxu0 0
    %1385 = vmatprep.subr.bf16.mxu0 0
    %1386 = vmatpush2.bf16.msra.mxu0 0
    %1387 = vmatprep.subr.bf16.mxu0 0
    %1388 = vmatpush2.bf16.msra.mxu0 0
    %1389 = vmatprep.subr.bf16.mxu0 0
    %1390 = vmatpush2.bf16.msra.mxu0 0
    %1391 = vmatprep.subr.bf16.mxu0 0
    %1392 = vmatpush2.bf16.msra.mxu0 0
    %1393 = vmatprep.subr.bf16.mxu0 0
    %1394 = vmatpush2.bf16.msra.mxu0 0
    %1395 = vmatprep.mubr.bf16.mxu0 0
    %1396 = vmatmul.mubr.bf16.gmra.mxu0 %v1358
    %v1397 = vpop.f32.mrf.mxu0
    %v1398 = vadd.f32 0.0, %v1397
    %v1399 = vpop.f32.mrf.mxu0
    %v1400 = vpop.f32.mrf.mxu0
    %v1401 = vadd.f32 0.0, %v1400
    %v1402 = vpop.f32.mrf.mxu0
    %1403 = vdwg.mxu0
    %v1405 = vsel %vm774, %v1257, 0
    %v1408 = vsel %vm1265, %v1261, 0
    %1410 = vmatprep.subr.bf16.mxu0 0
    %1411 = vmatpush1.bf16.msra.mxu0 0
    %1412 = vmatprep.subr.bf16.mxu0 0
    %1413 = vmatpush1.bf16.msra.mxu0 0
    %1414 = vmatprep.subr.bf16.mxu0 0
    %1415 = vmatpush1.bf16.msra.mxu0 0
    %1416 = vmatprep.subr.bf16.mxu0 0
    %1417 = vmatpush1.bf16.msra.mxu0 0
    %1418 = vmatprep.subr.bf16.mxu0 0
    %1419 = vmatpush1.bf16.msra.mxu0 0
    %1420 = vmatprep.subr.bf16.mxu0 0
    %1421 = vmatpush1.bf16.msra.mxu0 0
    %1422 = vmatprep.subr.bf16.mxu0 0
    %1423 = vmatpush1.bf16.msra.mxu0 0
    %1424 = vmatprep.subr.bf16.mxu0 0
    %1425 = vmatpush1.bf16.msra.mxu0 %v1408
    %1426 = vmatprep.subr.bf16.mxu0 0
    %1427 = vmatpush2.bf16.msra.mxu0 0
    %1428 = vmatprep.subr.bf16.mxu0 0
    %1429 = vmatpush2.bf16.msra.mxu0 0
    %1430 = vmatprep.subr.bf16.mxu0 0
    %1431 = vmatpush2.bf16.msra.mxu0 0
    %1432 = vmatprep.subr.bf16.mxu0 0
    %1433 = vmatpush2.bf16.msra.mxu0 0
    %1434 = vmatprep.subr.bf16.mxu0 0
    %1435 = vmatpush2.bf16.msra.mxu0 0
    %1436 = vmatprep.subr.bf16.mxu0 0
    %1437 = vmatpush2.bf16.msra.mxu0 0
    %1438 = vmatprep.subr.bf16.mxu0 0
    %1439 = vmatpush2.bf16.msra.mxu0 0
    %1440 = vmatprep.subr.bf16.mxu0 0
    %1441 = vmatpush2.bf16.msra.mxu0 0
    %1442 = vmatprep.mubr.bf16.mxu0 0
    %1443 = vmatmul.mubr.bf16.gmra.mxu0 %v1405
    %v1444 = vpop.f32.mrf.mxu0
    %v1445 = vadd.f32 0.0, %v1444
    %v1446 = vpop.f32.mrf.mxu0
    %v1447 = vpop.f32.mrf.mxu0
    %v1448 = vadd.f32 0.0, %v1447
    %v1449 = vpop.f32.mrf.mxu0
    %1450 = vdwg.mxu0
    %v1451 = vadd.f32 %v1304, %v1351
    %v1452 = vadd.f32 %v1307, %v1354
    %v1453 = vadd.f32 %v1451, %v1398
    %v1454 = vadd.f32 %v1452, %v1401
    %v1455 = vadd.f32 %v1453, %v1445
    %v1456 = vadd.f32 %v1454, %v1448
    %v1457 = vadd.f32 %v35, %v1455
    %v1458 = vadd.f32 %v36, %v1456
    %v1459 = vlaneseq
    %v1460 = vshrl.u32 %v1459, 7
    %v1461 = vsub.s32 2, %v1460
    %v1462 = vrot.slane %v37, %v1461
    %v1463 = vadd.f32 %v1457, %v1462
    %v1464 = vadd.f32 %v1458, %v1462
    %v1465 = vsel %vm38, %v1463, 0.0
    %1466 = vadd.xlane.f32.xlu0 %v1465
    %v1467 = vpop.xlane.xlu0 %1466
    %v1468 = vsel %vm38, %v1464, 0.0
    %1469 = vadd.xlane.f32.xlu0 %v1468
    %v1470 = vpop.xlane.xlu0 %1469
    %v1471 = vmul.f32 %v1467, %v45
    %v1472 = vmul.f32 %v1470, %v45
    %v1473 = vsub.f32 %v1463, %v1471
    %v1474 = vsub.f32 %v1464, %v1472
    %v1475 = vmul.f32 %v1473, %v1473
    %v1476 = vmul.f32 %v1474, %v1474
    %v1477 = vsel %vm38, %v1475, 0.0
    %1478 = vadd.xlane.f32.xlu0 %v1477
    %v1479 = vpop.xlane.xlu0 %1478
    %v1480 = vsel %vm38, %v1476, 0.0
    %1481 = vadd.xlane.f32.xlu0 %v1480
    %v1482 = vpop.xlane.xlu0 %1481
    %v1483 = vmul.f32 %v1479, %v45
    %v1484 = vmul.f32 %v1482, %v45
    %v1485 = vadd.f32 %v1483, 1e-05
    %v1486 = vadd.f32 %v1484, 1e-05
    %v1487 = vrsqrt.pop %v1485
    %v1488 = vrsqrt.pop %v1486
    %v1489 = vmul.f32 %v1473, %v1487
    %v1490 = vmul.f32 %v1474, %v1488
    %v1491 = vlaneseq
    %v1492 = vshrl.u32 %v1491, 7
    %v1493 = vsub.s32 3, %v1492
    %v1494 = vrot.slane %v37, %v1493
    %v1495 = vmul.f32 %v1489, %v1494
    %v1496 = vmul.f32 %v1490, %v1494
    %v1497 = vlaneseq
    %v1498 = vshrl.u32 %v1497, 7
    %v1499 = vsub.s32 4, %v1498
    %v1500 = vrot.slane %v37, %v1499
    %v1501 = vadd.f32 %v1495, %v1500
    %v1502 = vadd.f32 %v1496, %v1500
    %v1503 = vld [vmem:[%s6] sm:$0xff]
    %v1504 = vld [vmem:[%s6 + $0x8] sm:$0xff]
    %v1505 = vld [vmem:[%s6 + $0x10] sm:$0xff]
    %v1506 = vld [vmem:[%s6 + $0x18] sm:$0xff]
    %v1507 = vld [vmem:[%s6 + $0x20] sm:$0xff]
    %v1508 = vld [vmem:[%s6 + $0x28] sm:$0xff]
    %v1509 = vld [vmem:[%s6 + $0x30] sm:$0xff]
    %v1510 = vld [vmem:[%s6 + $0x38] sm:$0xff]
    %v1511 = vld [vmem:[%s6 + $0x40] sm:$0x11]
    %v1512 = vld [vmem:[%s6 + $0x48] sm:$0x11]
    %v1513 = vunpack.c.l.bf16 %v1511
    %v1514 = vunpack.c.h.bf16 %v1511
    %v1515 = vunpack.c.l.bf16 %v1512
    %v1516 = vunpack.c.h.bf16 %v1512
    %v1517 = vpack.c.bf16 %v1502, %v1501
    %v1518 = vlaneseq
    %v1519 = vshrl.u32 %v1518, 7
    %v1520 = vsub.s32 0, %v1519
    %v1521 = vrot.slane %v1513, %v1520
    %v1522 = vlaneseq
    %v1523 = vshrl.u32 %v1522, 7
    %v1524 = vsub.s32 0, %v1523
    %v1525 = vrot.slane %v1514, %v1524
    %v1526 = vlaneseq
    %v1527 = vshrl.u32 %v1526, 7
    %v1528 = vsub.s32 0, %v1527
    %v1529 = vrot.slane %v1515, %v1528
    %v1530 = vlaneseq
    %v1531 = vshrl.u32 %v1530, 7
    %v1532 = vsub.s32 0, %v1531
    %v1533 = vrot.slane %v1516, %v1532
    %v1542 = vunpack.c.l.b16 %v1503
    %v1543 = vunpack.c.h.b16 %v1503
    %v1544 = vunpack.c.l.b16 %v1504
    %v1545 = vunpack.c.h.b16 %v1504
    %v1546 = vunpack.c.l.b16 %v1505
    %v1547 = vunpack.c.h.b16 %v1505
    %v1548 = vunpack.c.l.b16 %v1506
    %v1549 = vunpack.c.h.b16 %v1506
    %v1550 = vunpack.c.l.b16 %v1507
    %v1551 = vunpack.c.h.b16 %v1507
    %v1552 = vunpack.c.l.b16 %v1508
    %v1553 = vunpack.c.h.b16 %v1508
    %v1554 = vunpack.c.l.b16 %v1509
    %v1555 = vunpack.c.h.b16 %v1509
    %v1556 = vunpack.c.l.b16 %v1510
    %v1557 = vunpack.c.h.b16 %v1510
    %v1558 = vpack.c.b16 %v1546, %v1542
    %v1559 = vpack.c.b16 %v1547, %v1543
    %v1560 = vpack.c.b16 %v1548, %v1544
    %v1561 = vpack.c.b16 %v1549, %v1545
    %v1562 = vpack.c.b16 %v1554, %v1550
    %v1563 = vpack.c.b16 %v1555, %v1551
    %v1564 = vpack.c.b16 %v1556, %v1552
    %v1565 = vpack.c.b16 %v1557, %v1553
    %v1575 = vsel %vm38, %v1517, 0
    %1577 = vmatprep.subr.bf16.mxu0 0
    %1578 = vmatpush1.bf16.msra.mxu0 0
    %1579 = vmatprep.subr.bf16.mxu0 0
    %1580 = vmatpush1.bf16.msra.mxu0 0
    %1581 = vmatprep.subr.bf16.mxu0 0
    %1582 = vmatpush1.bf16.msra.mxu0 0
    %1583 = vmatprep.subr.bf16.mxu0 0
    %1584 = vmatpush1.bf16.msra.mxu0 0
    %1585 = vmatprep.subr.bf16.mxu0 0
    %1586 = vmatpush1.bf16.msra.mxu0 0
    %1587 = vmatprep.subr.bf16.mxu0 0
    %1588 = vmatpush1.bf16.msra.mxu0 0
    %1589 = vmatprep.subr.bf16.mxu0 %v1563
    %1590 = vmatpush1.bf16.msra.mxu0 %v1562
    %1591 = vmatprep.subr.bf16.mxu0 %v1559
    %1592 = vmatpush1.bf16.msra.mxu0 %v1558
    %1593 = vmatprep.subr.bf16.mxu0 0
    %1594 = vmatpush2.bf16.msra.mxu0 0
    %1595 = vmatprep.subr.bf16.mxu0 0
    %1596 = vmatpush2.bf16.msra.mxu0 0
    %1597 = vmatprep.subr.bf16.mxu0 0
    %1598 = vmatpush2.bf16.msra.mxu0 0
    %1599 = vmatprep.subr.bf16.mxu0 0
    %1600 = vmatpush2.bf16.msra.mxu0 0
    %1601 = vmatprep.subr.bf16.mxu0 0
    %1602 = vmatpush2.bf16.msra.mxu0 0
    %1603 = vmatprep.subr.bf16.mxu0 0
    %1604 = vmatpush2.bf16.msra.mxu0 0
    %1605 = vmatprep.subr.bf16.mxu0 0
    %1606 = vmatpush2.bf16.msra.mxu0 0
    %1607 = vmatprep.subr.bf16.mxu0 0
    %1608 = vmatpush2.bf16.msra.mxu0 0
    %1609 = vmatprep.mubr.bf16.mxu0 0
    %1610 = vmatmul.mubr.bf16.gmra.mxu0 %v1575
    %v1611 = vpop.f32.mrf.mxu0
    %v1612 = vadd.f32 %v1521, %v1611
    %v1613 = vpop.f32.mrf.mxu0
    %v1614 = vadd.f32 %v1525, %v1613
    %v1615 = vpop.f32.mrf.mxu0
    %v1616 = vadd.f32 %v1521, %v1615
    %v1617 = vpop.f32.mrf.mxu0
    %v1618 = vadd.f32 %v1525, %v1617
    %1619 = vdwg.mxu0
    %1620 = vmatprep.subr.bf16.mxu0 0
    %1621 = vmatpush1.bf16.msra.mxu0 0
    %1622 = vmatprep.subr.bf16.mxu0 0
    %1623 = vmatpush1.bf16.msra.mxu0 0
    %1624 = vmatprep.subr.bf16.mxu0 0
    %1625 = vmatpush1.bf16.msra.mxu0 0
    %1626 = vmatprep.subr.bf16.mxu0 0
    %1627 = vmatpush1.bf16.msra.mxu0 0
    %1628 = vmatprep.subr.bf16.mxu0 0
    %1629 = vmatpush1.bf16.msra.mxu0 0
    %1630 = vmatprep.subr.bf16.mxu0 0
    %1631 = vmatpush1.bf16.msra.mxu0 0
    %1632 = vmatprep.subr.bf16.mxu0 %v1565
    %1633 = vmatpush1.bf16.msra.mxu0 %v1564
    %1634 = vmatprep.subr.bf16.mxu0 %v1561
    %1635 = vmatpush1.bf16.msra.mxu0 %v1560
    %1636 = vmatprep.subr.bf16.mxu0 0
    %1637 = vmatpush2.bf16.msra.mxu0 0
    %1638 = vmatprep.subr.bf16.mxu0 0
    %1639 = vmatpush2.bf16.msra.mxu0 0
    %1640 = vmatprep.subr.bf16.mxu0 0
    %1641 = vmatpush2.bf16.msra.mxu0 0
    %1642 = vmatprep.subr.bf16.mxu0 0
    %1643 = vmatpush2.bf16.msra.mxu0 0
    %1644 = vmatprep.subr.bf16.mxu0 0
    %1645 = vmatpush2.bf16.msra.mxu0 0
    %1646 = vmatprep.subr.bf16.mxu0 0
    %1647 = vmatpush2.bf16.msra.mxu0 0
    %1648 = vmatprep.subr.bf16.mxu0 0
    %1649 = vmatpush2.bf16.msra.mxu0 0
    %1650 = vmatprep.subr.bf16.mxu0 0
    %1651 = vmatpush2.bf16.msra.mxu0 0
    %1652 = vmatprep.mubr.bf16.mxu0 0
    %1653 = vmatmul.mubr.bf16.gmra.mxu0 %v1575
    %v1654 = vpop.f32.mrf.mxu0
    %v1655 = vadd.f32 %v1529, %v1654
    %v1656 = vpop.f32.mrf.mxu0
    %v1657 = vadd.f32 %v1533, %v1656
    %v1658 = vpop.f32.mrf.mxu0
    %v1659 = vadd.f32 %v1529, %v1658
    %v1660 = vpop.f32.mrf.mxu0
    %v1661 = vadd.f32 %v1533, %v1660
    %1662 = vdwg.mxu0
    %v1663 = vmul.f32 %v1612, 0.5
    %v1664 = vmul.f32 %v1614, 0.5
    %v1665 = vmul.f32 %v1655, 0.5
    %v1666 = vmul.f32 %v1657, 0.5
    %v1667 = vmul.f32 %v1616, 0.5
    %v1668 = vmul.f32 %v1618, 0.5
    %v1669 = vmul.f32 %v1659, 0.5
    %v1670 = vmul.f32 %v1661, 0.5
    %v1671 = vmul.f32 %v1612, 0.044715
    %v1672 = vmul.f32 %v1614, 0.044715
    %v1673 = vmul.f32 %v1655, 0.044715
    %v1674 = vmul.f32 %v1657, 0.044715
    %v1675 = vmul.f32 %v1616, 0.044715
    %v1676 = vmul.f32 %v1618, 0.044715
    %v1677 = vmul.f32 %v1659, 0.044715
    %v1678 = vmul.f32 %v1661, 0.044715
    %v1679 = vmul.f32 %v1671, %v1612
    %v1680 = vmul.f32 %v1672, %v1614
    %v1681 = vmul.f32 %v1673, %v1655
    %v1682 = vmul.f32 %v1674, %v1657
    %v1683 = vmul.f32 %v1675, %v1616
    %v1684 = vmul.f32 %v1676, %v1618
    %v1685 = vmul.f32 %v1677, %v1659
    %v1686 = vmul.f32 %v1678, %v1661
    %v1687 = vmul.f32 %v1679, %v1612
    %v1688 = vmul.f32 %v1680, %v1614
    %v1689 = vmul.f32 %v1681, %v1655
    %v1690 = vmul.f32 %v1682, %v1657
    %v1691 = vmul.f32 %v1683, %v1616
    %v1692 = vmul.f32 %v1684, %v1618
    %v1693 = vmul.f32 %v1685, %v1659
    %v1694 = vmul.f32 %v1686, %v1661
    %v1695 = vadd.f32 %v1612, %v1687
    %v1696 = vadd.f32 %v1614, %v1688
    %v1697 = vadd.f32 %v1655, %v1689
    %v1698 = vadd.f32 %v1657, %v1690
    %v1699 = vadd.f32 %v1616, %v1691
    %v1700 = vadd.f32 %v1618, %v1692
    %v1701 = vadd.f32 %v1659, %v1693
    %v1702 = vadd.f32 %v1661, %v1694
    %v1703 = vmul.f32 %v1695, 0.7978846
    %v1704 = vmul.f32 %v1696, 0.7978846
    %v1705 = vmul.f32 %v1697, 0.7978846
    %v1706 = vmul.f32 %v1698, 0.7978846
    %v1707 = vmul.f32 %v1699, 0.7978846
    %v1708 = vmul.f32 %v1700, 0.7978846
    %v1709 = vmul.f32 %v1701, 0.7978846
    %v1710 = vmul.f32 %v1702, 0.7978846
    %v1711 = vtanh.pop %v1703
    %v1712 = vtanh.pop %v1704
    %v1713 = vtanh.pop %v1705
    %v1714 = vtanh.pop %v1706
    %v1715 = vtanh.pop %v1707
    %v1716 = vtanh.pop %v1708
    %v1717 = vtanh.pop %v1709
    %v1718 = vtanh.pop %v1710
    %v1719 = vadd.f32 %v1711, 1.0
    %v1720 = vadd.f32 %v1712, 1.0
    %v1721 = vadd.f32 %v1713, 1.0
    %v1722 = vadd.f32 %v1714, 1.0
    %v1723 = vadd.f32 %v1715, 1.0
    %v1724 = vadd.f32 %v1716, 1.0
    %v1725 = vadd.f32 %v1717, 1.0
    %v1726 = vadd.f32 %v1718, 1.0
    %v1727 = vmul.f32 %v1663, %v1719
    %v1728 = vmul.f32 %v1664, %v1720
    %v1729 = vmul.f32 %v1665, %v1721
    %v1730 = vmul.f32 %v1666, %v1722
    %v1731 = vmul.f32 %v1667, %v1723
    %v1732 = vmul.f32 %v1668, %v1724
    %v1733 = vmul.f32 %v1669, %v1725
    %v1734 = vmul.f32 %v1670, %v1726
    %v1735 = vpack.c.bf16 %v1731, %v1727
    %v1736 = vpack.c.bf16 %v1732, %v1728
    %v1737 = vpack.c.bf16 %v1733, %v1729
    %v1738 = vpack.c.bf16 %v1734, %v1730
    %v1739 = vld [vmem:[%s7] sm:$0xf]
    %v1740 = vld [vmem:[%s7 + $0x4] sm:$0xf]
    %v1741 = vld [vmem:[%s7 + $0x8] sm:$0xf]
    %v1742 = vld [vmem:[%s7 + $0xc] sm:$0xf]
    %v1743 = vld [vmem:[%s7 + $0x10] sm:$0xf]
    %v1744 = vld [vmem:[%s7 + $0x14] sm:$0xf]
    %v1745 = vld [vmem:[%s7 + $0x18] sm:$0xf]
    %v1746 = vld [vmem:[%s7 + $0x1c] sm:$0xf]
    %v1747 = vld [vmem:[%s7 + $0x20] sm:$0xf]
    %v1748 = vld [vmem:[%s7 + $0x24] sm:$0xf]
    %v1749 = vld [vmem:[%s7 + $0x28] sm:$0xf]
    %v1750 = vld [vmem:[%s7 + $0x2c] sm:$0xf]
    %v1751 = vld [vmem:[%s7 + $0x30] sm:$0xf]
    %v1752 = vld [vmem:[%s7 + $0x34] sm:$0xf]
    %v1753 = vld [vmem:[%s7 + $0x38] sm:$0xf]
    %v1754 = vld [vmem:[%s7 + $0x3c] sm:$0xf]
    %v1755 = vld [vmem:[%s7 + $0x40] sm:$0xf]
    %v1756 = vld [vmem:[%s7 + $0x44] sm:$0xf]
    %v1757 = vld [vmem:[%s7 + $0x48] sm:$0xf]
    %v1758 = vld [vmem:[%s7 + $0x4c] sm:$0xf]
    %v1759 = vld [vmem:[%s7 + $0x50] sm:$0xf]
    %v1760 = vld [vmem:[%s7 + $0x54] sm:$0xf]
    %v1761 = vld [vmem:[%s7 + $0x58] sm:$0xf]
    %v1762 = vld [vmem:[%s7 + $0x5c] sm:$0xf]
    %v1763 = vld [vmem:[%s7 + $0x60] sm:$0xf]
    %v1764 = vld [vmem:[%s7 + $0x64] sm:$0xf]
    %v1765 = vld [vmem:[%s7 + $0x68] sm:$0xf]
    %v1766 = vld [vmem:[%s7 + $0x6c] sm:$0xf]
    %v1767 = vld [vmem:[%s7 + $0x70] sm:$0xf]
    %v1768 = vld [vmem:[%s7 + $0x74] sm:$0xf]
    %v1769 = vld [vmem:[%s7 + $0x78] sm:$0xf]
    %v1770 = vld [vmem:[%s7 + $0x7c] sm:$0xf]
    %v1771 = vld [vmem:[%s7 + $0x80] sm:$0xf]
    %v1772 = vld [vmem:[%s7 + $0x84] sm:$0xf]
    %v1773 = vld [vmem:[%s7 + $0x88] sm:$0xf]
    %v1774 = vld [vmem:[%s7 + $0x8c] sm:$0xf]
    %v1775 = vld [vmem:[%s7 + $0x90] sm:$0xf]
    %v1776 = vld [vmem:[%s7 + $0x94] sm:$0xf]
    %v1777 = vld [vmem:[%s7 + $0x98] sm:$0xf]
    %v1778 = vld [vmem:[%s7 + $0x9c] sm:$0xf]
    %v1779 = vld [vmem:[%s7 + $0xa0] sm:$0xf]
    %v1780 = vld [vmem:[%s7 + $0xa4] sm:$0xf]
    %v1781 = vld [vmem:[%s7 + $0xa8] sm:$0xf]
    %v1782 = vld [vmem:[%s7 + $0xac] sm:$0xf]
    %v1783 = vld [vmem:[%s7 + $0xb0] sm:$0xf]
    %v1784 = vld [vmem:[%s7 + $0xb4] sm:$0xf]
    %v1785 = vld [vmem:[%s7 + $0xb8] sm:$0xf]
    %v1786 = vld [vmem:[%s7 + $0xbc] sm:$0xf]
    %v1787 = vld [vmem:[%s7 + $0xc0] sm:$0xf]
    %v1788 = vld [vmem:[%s7 + $0xc4] sm:$0xf]
    %v1789 = vld [vmem:[%s7 + $0xc8] sm:$0xf]
    %v1790 = vld [vmem:[%s7 + $0xcc] sm:$0xf]
    %v1791 = vld [vmem:[%s7 + $0xd0] sm:$0xf]
    %v1792 = vld [vmem:[%s7 + $0xd4] sm:$0xf]
    %v1793 = vld [vmem:[%s7 + $0xd8] sm:$0xf]
    %v1794 = vld [vmem:[%s7 + $0xdc] sm:$0xf]
    %v1795 = vld [vmem:[%s7 + $0xe0] sm:$0xf]
    %v1796 = vld [vmem:[%s7 + $0xe4] sm:$0xf]
    %v1797 = vld [vmem:[%s7 + $0xe8] sm:$0xf]
    %v1798 = vld [vmem:[%s7 + $0xec] sm:$0xf]
    %v1799 = vld [vmem:[%s7 + $0xf0] sm:$0xf]
    %v1800 = vld [vmem:[%s7 + $0xf4] sm:$0xf]
    %v1801 = vld [vmem:[%s7 + $0xf8] sm:$0xf]
    %v1802 = vld [vmem:[%s7 + $0xfc] sm:$0xf]
    %v1867 = vunpack.c.l.b16 %v1739
    %v1868 = vunpack.c.l.b16 %v1740
    %v1869 = vunpack.c.l.b16 %v1741
    %v1870 = vunpack.c.l.b16 %v1742
    %v1871 = vunpack.c.l.b16 %v1743
    %v1872 = vunpack.c.l.b16 %v1744
    %v1873 = vunpack.c.l.b16 %v1745
    %v1874 = vunpack.c.l.b16 %v1746
    %v1875 = vunpack.c.l.b16 %v1747
    %v1876 = vunpack.c.l.b16 %v1748
    %v1877 = vunpack.c.l.b16 %v1749
    %v1878 = vunpack.c.l.b16 %v1750
    %v1879 = vunpack.c.l.b16 %v1751
    %v1880 = vunpack.c.l.b16 %v1752
    %v1881 = vunpack.c.l.b16 %v1753
    %v1882 = vunpack.c.l.b16 %v1754
    %v1883 = vunpack.c.l.b16 %v1755
    %v1884 = vunpack.c.l.b16 %v1756
    %v1885 = vunpack.c.l.b16 %v1757
    %v1886 = vunpack.c.l.b16 %v1758
    %v1887 = vunpack.c.l.b16 %v1759
    %v1888 = vunpack.c.l.b16 %v1760
    %v1889 = vunpack.c.l.b16 %v1761
    %v1890 = vunpack.c.l.b16 %v1762
    %v1891 = vunpack.c.l.b16 %v1763
    %v1892 = vunpack.c.l.b16 %v1764
    %v1893 = vunpack.c.l.b16 %v1765
    %v1894 = vunpack.c.l.b16 %v1766
    %v1895 = vunpack.c.l.b16 %v1767
    %v1896 = vunpack.c.l.b16 %v1768
    %v1897 = vunpack.c.l.b16 %v1769
    %v1898 = vunpack.c.l.b16 %v1770
    %v1899 = vunpack.c.l.b16 %v1771
    %v1900 = vunpack.c.l.b16 %v1772
    %v1901 = vunpack.c.l.b16 %v1773
    %v1902 = vunpack.c.l.b16 %v1774
    %v1903 = vunpack.c.l.b16 %v1775
    %v1904 = vunpack.c.l.b16 %v1776
    %v1905 = vunpack.c.l.b16 %v1777
    %v1906 = vunpack.c.l.b16 %v1778
    %v1907 = vunpack.c.l.b16 %v1779
    %v1908 = vunpack.c.l.b16 %v1780
    %v1909 = vunpack.c.l.b16 %v1781
    %v1910 = vunpack.c.l.b16 %v1782
    %v1911 = vunpack.c.l.b16 %v1783
    %v1912 = vunpack.c.l.b16 %v1784
    %v1913 = vunpack.c.l.b16 %v1785
    %v1914 = vunpack.c.l.b16 %v1786
    %v1915 = vunpack.c.l.b16 %v1787
    %v1916 = vunpack.c.l.b16 %v1788
    %v1917 = vunpack.c.l.b16 %v1789
    %v1918 = vunpack.c.l.b16 %v1790
    %v1919 = vunpack.c.l.b16 %v1791
    %v1920 = vunpack.c.l.b16 %v1792
    %v1921 = vunpack.c.l.b16 %v1793
    %v1922 = vunpack.c.l.b16 %v1794
    %v1923 = vunpack.c.l.b16 %v1795
    %v1924 = vunpack.c.l.b16 %v1796
    %v1925 = vunpack.c.l.b16 %v1797
    %v1926 = vunpack.c.l.b16 %v1798
    %v1927 = vunpack.c.l.b16 %v1799
    %v1928 = vunpack.c.l.b16 %v1800
    %v1929 = vunpack.c.l.b16 %v1801
    %v1930 = vunpack.c.l.b16 %v1802
    %v1931 = vpack.c.b16 %v1868, %v1867
    %v1932 = vpack.c.b16 %v1870, %v1869
    %v1933 = vpack.c.b16 %v1872, %v1871
    %v1934 = vpack.c.b16 %v1874, %v1873
    %v1935 = vpack.c.b16 %v1876, %v1875
    %v1936 = vpack.c.b16 %v1878, %v1877
    %v1937 = vpack.c.b16 %v1880, %v1879
    %v1938 = vpack.c.b16 %v1882, %v1881
    %v1939 = vpack.c.b16 %v1884, %v1883
    %v1940 = vpack.c.b16 %v1886, %v1885
    %v1941 = vpack.c.b16 %v1888, %v1887
    %v1942 = vpack.c.b16 %v1890, %v1889
    %v1943 = vpack.c.b16 %v1892, %v1891
    %v1944 = vpack.c.b16 %v1894, %v1893
    %v1945 = vpack.c.b16 %v1896, %v1895
    %v1946 = vpack.c.b16 %v1898, %v1897
    %v1947 = vpack.c.b16 %v1900, %v1899
    %v1948 = vpack.c.b16 %v1902, %v1901
    %v1949 = vpack.c.b16 %v1904, %v1903
    %v1950 = vpack.c.b16 %v1906, %v1905
    %v1951 = vpack.c.b16 %v1908, %v1907
    %v1952 = vpack.c.b16 %v1910, %v1909
    %v1953 = vpack.c.b16 %v1912, %v1911
    %v1954 = vpack.c.b16 %v1914, %v1913
    %v1955 = vpack.c.b16 %v1916, %v1915
    %v1956 = vpack.c.b16 %v1918, %v1917
    %v1957 = vpack.c.b16 %v1920, %v1919
    %v1958 = vpack.c.b16 %v1922, %v1921
    %v1959 = vpack.c.b16 %v1924, %v1923
    %v1960 = vpack.c.b16 %v1926, %v1925
    %v1961 = vpack.c.b16 %v1928, %v1927
    %v1962 = vpack.c.b16 %v1930, %v1929
    %1995 = vmatprep.subr.bf16.mxu0 0
    %1996 = vmatpush1.bf16.msra.mxu0 %v1938
    %1997 = vmatprep.subr.bf16.mxu0 0
    %1998 = vmatpush1.bf16.msra.mxu0 %v1937
    %1999 = vmatprep.subr.bf16.mxu0 0
    %2000 = vmatpush1.bf16.msra.mxu0 %v1936
    %2001 = vmatprep.subr.bf16.mxu0 0
    %2002 = vmatpush1.bf16.msra.mxu0 %v1935
    %2003 = vmatprep.subr.bf16.mxu0 0
    %2004 = vmatpush1.bf16.msra.mxu0 %v1934
    %2005 = vmatprep.subr.bf16.mxu0 0
    %2006 = vmatpush1.bf16.msra.mxu0 %v1933
    %2007 = vmatprep.subr.bf16.mxu0 0
    %2008 = vmatpush1.bf16.msra.mxu0 %v1932
    %2009 = vmatprep.subr.bf16.mxu0 0
    %2010 = vmatpush1.bf16.msra.mxu0 %v1931
    %2011 = vmatprep.subr.bf16.mxu0 0
    %2012 = vmatpush2.bf16.msra.mxu0 %v1946
    %2013 = vmatprep.subr.bf16.mxu0 0
    %2014 = vmatpush2.bf16.msra.mxu0 %v1945
    %2015 = vmatprep.subr.bf16.mxu0 0
    %2016 = vmatpush2.bf16.msra.mxu0 %v1944
    %2017 = vmatprep.subr.bf16.mxu0 0
    %2018 = vmatpush2.bf16.msra.mxu0 %v1943
    %2019 = vmatprep.subr.bf16.mxu0 0
    %2020 = vmatpush2.bf16.msra.mxu0 %v1942
    %2021 = vmatprep.subr.bf16.mxu0 0
    %2022 = vmatpush2.bf16.msra.mxu0 %v1941
    %2023 = vmatprep.subr.bf16.mxu0 0
    %2024 = vmatpush2.bf16.msra.mxu0 %v1940
    %2025 = vmatprep.subr.bf16.mxu0 0
    %2026 = vmatpush2.bf16.msra.mxu0 %v1939
    %2027 = vmatprep.mubr.bf16.mxu0 %v1736
    %2028 = vmatmul.mubr.bf16.gmra.mxu0 %v1735
    %v2029 = vpop.f32.mrf.mxu0
    %v2030 = vadd.f32 0.0, %v2029
    %v2031 = vpop.f32.mrf.mxu0
    %v2032 = vpop.f32.mrf.mxu0
    %v2033 = vadd.f32 0.0, %v2032
    %v2034 = vpop.f32.mrf.mxu0
    %2035 = vdwg.mxu0
    %2036 = vmatprep.subr.bf16.mxu0 0
    %2037 = vmatpush1.bf16.msra.mxu0 %v1954
    %2038 = vmatprep.subr.bf16.mxu0 0
    %2039 = vmatpush1.bf16.msra.mxu0 %v1953
    %2040 = vmatprep.subr.bf16.mxu0 0
    %2041 = vmatpush1.bf16.msra.mxu0 %v1952
    %2042 = vmatprep.subr.bf16.mxu0 0
    %2043 = vmatpush1.bf16.msra.mxu0 %v1951
    %2044 = vmatprep.subr.bf16.mxu0 0
    %2045 = vmatpush1.bf16.msra.mxu0 %v1950
    %2046 = vmatprep.subr.bf16.mxu0 0
    %2047 = vmatpush1.bf16.msra.mxu0 %v1949
    %2048 = vmatprep.subr.bf16.mxu0 0
    %2049 = vmatpush1.bf16.msra.mxu0 %v1948
    %2050 = vmatprep.subr.bf16.mxu0 0
    %2051 = vmatpush1.bf16.msra.mxu0 %v1947
    %2052 = vmatprep.subr.bf16.mxu0 0
    %2053 = vmatpush2.bf16.msra.mxu0 %v1962
    %2054 = vmatprep.subr.bf16.mxu0 0
    %2055 = vmatpush2.bf16.msra.mxu0 %v1961
    %2056 = vmatprep.subr.bf16.mxu0 0
    %2057 = vmatpush2.bf16.msra.mxu0 %v1960
    %2058 = vmatprep.subr.bf16.mxu0 0
    %2059 = vmatpush2.bf16.msra.mxu0 %v1959
    %2060 = vmatprep.subr.bf16.mxu0 0
    %2061 = vmatpush2.bf16.msra.mxu0 %v1958
    %2062 = vmatprep.subr.bf16.mxu0 0
    %2063 = vmatpush2.bf16.msra.mxu0 %v1957
    %2064 = vmatprep.subr.bf16.mxu0 0
    %2065 = vmatpush2.bf16.msra.mxu0 %v1956
    %2066 = vmatprep.subr.bf16.mxu0 0
    %2067 = vmatpush2.bf16.msra.mxu0 %v1955
    %2068 = vmatprep.mubr.bf16.mxu0 %v1738
    %2069 = vmatmul.mubr.bf16.gmra.mxu0 %v1737
    %v2070 = vpop.f32.mrf.mxu0
    %v2071 = vadd.f32 %v2030, %v2070
    %v2072 = vpop.f32.mrf.mxu0
    %v2073 = vpop.f32.mrf.mxu0
    %v2074 = vadd.f32 %v2033, %v2073
    %v2075 = vpop.f32.mrf.mxu0
    %2076 = vdwg.mxu0
    %v2077 = vadd.f32 %v1463, %v2071
    %v2078 = vadd.f32 %v1464, %v2074
    %v2079 = vlaneseq
    %v2080 = vshrl.u32 %v2079, 7
    %v2081 = vsub.s32 5, %v2080
    %v2082 = vrot.slane %v37, %v2081
    %v2083 = vadd.f32 %v2077, %v2082
    %v2084 = vadd.f32 %v2078, %v2082
    %2085 = vst.msk [vmem:[#allocation2] sm:$0xff] %vm38, %v2083
    %2086 = vst.msk [vmem:[#allocation2 + $0x8] sm:$0xff] %vm38, %v2084
    // Predicated region
    $region34: #{transformer_forward.1} parent=1 // pred_check
      _
    $region35: #{transformer_forward.1} parent=1 // pred_check_branch
      %2088 = sbr.rel (0) target = $region37
    $region36: #{transformer_forward.1} parent=1 // pred_region
      %s2090 = ssub.s32 256, 256
      %2091 = vsyncadd [#allocation3], %s2090
      %s2092 = sshll.u32 [#allocation2], 4
      %s2093 = int_to_ptr.vmem [resolvable:$true] %s2092
      %2098 = dma.vmem_to_hbm [thread:$0]  %s2093, 256, %s8, [#allocation3], 128, 128, 8
    $region37: #{transformer_forward.1} parent=1 // pred_fallthru
      _
    // Predicated region
    $region38: #{transformer_forward.1} parent=1 // pred_check
      _
    $region39: #{transformer_forward.1} parent=1 // pred_check_branch
      %2100 = sbr.rel (0) target = $region41
    $region40: #{transformer_forward.1} parent=1 // pred_region
      %2101 = dma.done [#allocation3], 256
    $region41: #{transformer_forward.1} parent=1 // pred_fallthru
      _
    %2102 = vsyncpa [#allocation3], 1

</llo_original>
